<compile_context>
chip_gen: v6e
topology: v6e:2x2x1
jax: 0.10.0
libtpu: 0.0.40
codegen_flags: <defaults>
</compile_context>

<pallas_src>
import functools

import jax
import jax.numpy as jnp
from jax.experimental import pallas as pl
from jax.experimental.pallas import tpu as pltpu


# --------------------------------------------------------------------------
# Pallas kernel: fused MLP (conv1x1 + folded BN + ReLU) + pool over K samples.
# K is inside the block; the whole reduction happens in one kernel invocation.
# --------------------------------------------------------------------------
def _make_fused_kernel(num_layers: int, K: int, pool_mod: str):
    def kernel(*refs):
        x_ref = refs[0]                        # (1,1,Cin,K,TILE_M) bf16
        params = refs[1:1 + 2 * num_layers]    # interleaved (w, shift)
        out_ref = refs[1 + 2 * num_layers]     # (1,1,Cout,TILE_M)

        acc = None
        # K is a compile-time constant; the unrolled loop lets the scheduler
        # pipeline the per-sample MLP chains on the MXU while the pool maxes
        # run on the VPU.  Each k loads only a (Cin, TILE_M) slab from VMEM.
        for k in range(K):
            h = x_ref[0, 0, :, k, :]           # (Cin, TILE_M) bf16
            for l in range(num_layers):
                w = params[2 * l][0]           # (Cout_l, Cin_l) bf16, BN-scaled
                shift = params[2 * l + 1][0]   # (Cout_l, 1) f32 folded BN shift
                h = jnp.dot(w, h, preferred_element_type=jnp.float32) + shift
                h = jnp.maximum(h, 0.0)        # ReLU (f32)
                if l + 1 < num_layers:
                    h = h.astype(jnp.bfloat16)
            if acc is None:
                acc = h
            elif pool_mod == 'max':
                acc = jnp.maximum(acc, h)
            else:
                acc = acc + h
        if pool_mod == 'avg':
            acc = acc * (1.0 / K)
        # Direct lane-dense store; no scratch accumulator / extra copy pass.
        out_ref[0, 0] = acc.astype(out_ref.dtype)

    return kernel


def fused_mlp_pool(grouped, weights, shifts, *, pool_mod='max',
                   out_dtype=jnp.float32):
    """grouped: (S, B, Cin, K, M) bf16  (channels on sublanes, M on lanes);
    weights[l]: (S, Cout_l, Cin_l) bf16 with BN scale folded in;
    shifts[l]:  (S, Cout_l, 1)   f32 folded BN shift.
    Returns (S, B, Cout_last, M) — already in PyTorch's (C, M) layout.
    out_dtype=jnp.bfloat16 halves HBM writeback if downstream tolerates it."""
    S, B, Cin, K, M = grouped.shape
    num_layers = len(weights)
    Cout = weights[-1].shape[1]
    cmax = max(w.shape[1] for w in weights)
    out_bytes = jnp.dtype(out_dtype).itemsize

    # ---- tile_m: biggest lane-dense tile whose pipelined working set stays
    # under a conservative budget (safe for v7x 64 MiB VMEM; plenty of slack
    # on v5e/v6e's 128 MiB).
    budget = 20 << 20

    def working_set(tm):
        in_blk = Cin * K * tm * 2                       # bf16 input block
        out_blk = Cout * tm * out_bytes                 # output block
        w_blk = sum(w.shape[1] * w.shape[2] * 2 + w.shape[1] * 4
                    for w in weights)                   # weights + shifts
        inter = cmax * tm * 4                           # widest f32 activation
        return 2 * (in_blk + out_blk + w_blk) + 4 * inter

    if M % 128 == 0:
        tile_m = 128
        for cand in (1024, 512, 256):
            if M % cand == 0 and working_set(cand) <= budget:
                tile_m = cand
                break
    else:
        tile_m = M          # small / odd M: one full-extent block
    n_mt = M // tile_m

    kernel = _make_fused_kernel(num_layers, K, pool_mod)

    in_specs = [pl.BlockSpec((1, 1, Cin, K, tile_m),
                             lambda s, b, mi: (s, b, 0, 0, mi))]
    flat = [grouped]
    for w, sh in zip(weights, shifts):
        in_specs.append(pl.BlockSpec((1,) + w.shape[1:],
                                     lambda s, b, mi: (s, 0, 0)))
        in_specs.append(pl.BlockSpec((1,) + sh.shape[1:],
                                     lambda s, b, mi: (s, 0, 0)))
        flat += [w, sh]

    out_spec = pl.BlockSpec((1, 1, Cout, tile_m),
                            lambda s, b, mi: (s, b, 0, mi))

    est = working_set(tile_m)
    vmem_limit = int(min(48 << 20, max(2 * est, 16 << 20)))

    return pl.pallas_call(
        kernel,
        out_shape=jax.ShapeDtypeStruct((S, B, Cout, M), out_dtype),
        grid=(S, B, n_mt),
        in_specs=in_specs,
        out_specs=out_spec,
        compiler_params=pltpu.CompilerParams(
            dimension_semantics=("parallel", "parallel", "parallel"),
            vmem_limit_bytes=vmem_limit),
    )(*flat)


# --------------------------------------------------------------------------
# Plain-JAX glue: D-FPS sampler, ball query (top_k, no argsort), gathers
# --------------------------------------------------------------------------
def furthest_point_sample(xyz, npoint):
    """D-FPS, matches mmdet3d semantics (first index = 0)."""
    B, N, _ = xyz.shape
    dist = jnp.full((B, N), 1e10, dtype=jnp.float32)
    farthest = jnp.zeros((B,), dtype=jnp.int32)
    idxs = jnp.zeros((B, npoint), dtype=jnp.int32)

    def body(i, carry):
        dist, farthest, idxs = carry
        idxs = idxs.at[:, i].set(farthest)
        centroid = jnp.take_along_axis(xyz, farthest[:, None, None], axis=1)
        d = jnp.sum((xyz - centroid) ** 2, axis=-1)
        dist = jnp.minimum(dist, d)
        farthest = jnp.argmax(dist, axis=-1).astype(jnp.int32)
        return dist, farthest, idxs

    _, _, idxs = jax.lax.fori_loop(0, npoint, body, (dist, farthest, idxs))
    return idxs


def ball_query(radius, nsample, xyz, new_xyz):
    """(B, M, nsample) int32: first `nsample` points of `xyz` within `radius`
    of each center, remaining slots padded with the first valid index (index 0
    when no neighbour exists) — same semantics as the CUDA op.  Uses
    lax.top_k (O(N*k)) instead of a full argsort."""
    N = xyz.shape[1]
    d2 = jnp.sum((new_xyz[:, :, None, :] - xyz[:, None, :, :]) ** 2, axis=-1)
    within = d2 < (radius ** 2)                                  # (B, M, N)
    ar = jnp.arange(N, dtype=jnp.int32)
    sort_key = jnp.where(within, ar, N + ar)   # in-radius first, by index
    _, order = jax.lax.top_k(-sort_key, nsample)                 # (B, M, k)
    order = order.astype(jnp.int32)
    valid = jnp.take_along_axis(within, order, axis=-1)          # slot in radius?
    first = order[:, :, :1]                    # first in-radius idx (or 0 if none)
    return jnp.where(valid, order, first)


# --------------------------------------------------------------------------
# PointSAModuleMSG forward (functional)
# --------------------------------------------------------------------------
def point_sa_module_msg_forward(points_xyz, features, params, *,
                                num_point, radii, sample_nums,
                                use_xyz=True, pool_mod='max',
                                normalize_xyz=False):
    """points_xyz: (B, N, 3); features: (B, C, N).
    params: list (per scale) of list (per layer) of dicts with 'w' (Cout,Cin),
    'gamma', 'beta', 'mean', 'var' (Cout,)."""
    B, N, _ = points_xyz.shape
    num_scales = len(radii)
    eps = 1e-5

    # Points_Sampler (D-FPS, range -1) + gather_points
    indices = furthest_point_sample(points_xyz, num_point)            # (B, M)
    new_xyz = jnp.take_along_axis(points_xyz, indices[:, :, None], axis=1)

    # Channel-major views (tiny tensors — only 3 / C channels).
    xyz_cm = jnp.transpose(points_xyz, (0, 2, 1))                     # (B, 3, N)
    new_xyz_cm = jnp.transpose(new_xyz, (0, 2, 1))                    # (B, 3, M)
    feats_cm = features                                               # (B, C, N)

    # Fuse scales with identical (K, MLP widths) into one pallas_call.
    def _sig(i):
        return (sample_nums[i], tuple(tuple(l['w'].shape) for l in params[i]))

    groups = {}
    for i in range(num_scales):
        groups.setdefault(_sig(i), []).append(i)

    per_scale_out = [None] * num_scales
    for _, scale_ids in groups.items():
        K = sample_nums[scale_ids[0]]

        # Stacked ball-query indices: (S, B, K, M) (tiny int tensor).
        idx = jnp.stack(
            [ball_query(radii[i], K, points_xyz, new_xyz) for i in scale_ids],
            axis=0)                                                   # (S,B,M,K)
        idx = jnp.transpose(idx, (0, 1, 3, 2))                        # (S,B,K,M)
        idx5 = idx[:, :, None, :, :]                                  # (S,B,1,K,M)

        # Gather directly into the kernel layout (S, B, C, K, M): channels on
        # sublanes, centers M lane-dense, K folded into the block.
        g_xyz = jnp.take_along_axis(xyz_cm[None, :, :, None, :], idx5, axis=4)
        g_xyz = g_xyz - new_xyz_cm[None, :, :, None, :]
        if normalize_xyz:
            radii_arr = jnp.asarray([radii[i] for i in scale_ids], jnp.float32)
            g_xyz = g_xyz / radii_arr[:, None, None, None, None]
        if features is not None:
            g_feat = jnp.take_along_axis(feats_cm[None, :, :, None, :], idx5,
                                         axis=4)
            grouped = (jnp.concatenate([g_xyz, g_feat], axis=2)
                       if use_xyz else g_feat)
        else:
            grouped = g_xyz
        grouped = grouped.astype(jnp.bfloat16)                        # (S,B,Cin,K,M)

        # Fold BN (inference form): scale into the conv weight, keep shift.
        num_layers = len(params[scale_ids[0]])
        ws, shs = [], []
        for l in range(num_layers):
            w_l, s_l = [], []
            for i in scale_ids:
                layer = params[i][l]
                scale = layer['gamma'] / jnp.sqrt(layer['var'] + eps)
                shift = layer['beta'] - layer['mean'] * scale
                w_l.append((layer['w'] * scale[:, None]).astype(jnp.bfloat16))
                s_l.append(shift[:, None].astype(jnp.float32))
            ws.append(jnp.stack(w_l, axis=0))                         # (S,Cout,Cin)
            shs.append(jnp.stack(s_l, axis=0))                        # (S,Cout,1)

        pooled = fused_mlp_pool(grouped, ws, shs, pool_mod=pool_mod)  # (S,B,Cout,M)
        for pos, i in enumerate(scale_ids):
            per_scale_out[i] = pooled[pos]

    new_features = jnp.concatenate(per_scale_out, axis=1)             # (B,ΣCout,M)
    return new_xyz, new_features, indices


# --------------------------------------------------------------------------
# Deterministic parameter construction
# --------------------------------------------------------------------------
def build_params(key, mlp_channels, in_feat_channels, use_xyz=True):
    params = []
    for spec in mlp_channels:
        spec = list(spec)
        spec[0] = in_feat_channels + (3 if use_xyz else 0)
        layers = []
        for l in range(len(spec) - 1):
            key, kw = jax.random.split(key)
            c_in, c_out = spec[l], spec[l + 1]
            w = 0.1 * jax.random.normal(kw, (c_out, c_in), dtype=jnp.float32)
            gamma = 1.0 + 0.01 * jnp.arange(c_out, dtype=jnp.float32)
            beta = 0.01 * jnp.arange(c_out, dtype=jnp.float32)
            mean = jnp.zeros((c_out,), jnp.float32)
            var = jnp.ones((c_out,), jnp.float32)
            layers.append(dict(w=w, gamma=gamma, beta=beta, mean=mean, var=var))
        params.append(layers)
    return params


# --------------------------------------------------------------------------
if __name__ == "__main__":
    key = jax.random.PRNGKey(0)
    k_xyz, k_feat, k_params = jax.random.split(key, 3)

    B, N, C_feat = 2, 16, 4
    num_point = 8
    radii = [0.5, 1.0]
    sample_nums = [8, 8]
    mlp_channels = [[C_feat, 16, 32], [C_feat, 16, 32]]

    points_xyz = jax.random.uniform(k_xyz, (B, N, 3), dtype=jnp.float32)
    features = jax.random.normal(k_feat, (B, C_feat, N), dtype=jnp.float32)

    params = build_params(k_params, mlp_channels, C_feat, use_xyz=True)

    fwd = jax.jit(functools.partial(
        point_sa_module_msg_forward,
        num_point=num_point, radii=radii, sample_nums=sample_nums,
        use_xyz=True, pool_mod='max', normalize_xyz=False))

    new_xyz, new_features, indices = fwd(points_xyz, features, params)
    jax.block_until_ready((new_xyz, new_features, indices))

    assert new_xyz.shape == (B, num_point, 3)
    assert new_features.shape == (B, sum(m[-1] for m in mlp_channels), num_point)
    assert indices.shape == (B, num_point)
    assert bool(jnp.all(jnp.isfinite(new_features)))
    # TODO(synk): F-FPS / FS samplers, dilated (min_radius) ball query, the
    # GroupAll (num_point=None) path and externally supplied indices/target_xyz
    # are not exercised by the default config and are not implemented.
    print("KERNEL_OK")
</pallas_src>

<mosaic_0001>
module attributes {stable_mosaic.version = 11 : i64} {
  func.func @kernel(%arg0: i32, %arg1: i32, %arg2: i32, %arg3: memref<1x1x7x8x8xbf16, #tpu.memory_space<vmem>>, %arg4: memref<1x16x7xbf16, #tpu.memory_space<vmem>>, %arg5: memref<1x16x1xf32, #tpu.memory_space<vmem>>, %arg6: memref<1x32x16xbf16, #tpu.memory_space<vmem>>, %arg7: memref<1x32x1xf32, #tpu.memory_space<vmem>>, %arg8: memref<1x1x32x8xf32, #tpu.memory_space<vmem>>) attributes {dimension_semantics = [#tpu.dimension_semantics<parallel>, #tpu.dimension_semantics<parallel>, #tpu.dimension_semantics<parallel>], iteration_bounds = array<i64: 2, 2, 1>, scalar_prefetch = 0 : i64, scratch_operands = 0 : i64, tpu.core_type = #tpu.core_type<tc>, window_params = [{transform_indices = @transform_0, window_bounds = array<i64: 1, 1, 7, 8, 8>}, {transform_indices = @transform_1, window_bounds = array<i64: 1, 16, 7>}, {transform_indices = @transform_2, window_bounds = array<i64: 1, 16, 1>}, {transform_indices = @transform_3, window_bounds = array<i64: 1, 32, 16>}, {transform_indices = @transform_4, window_bounds = array<i64: 1, 32, 1>}, {transform_indices = @transform_5, window_bounds = array<i64: 1, 1, 32, 8>}]} {
    %c0 = arith.constant 0 : index
    %c0_0 = arith.constant 0 : index
    %c0_1 = arith.constant 0 : index
    %c0_2 = arith.constant 0 : index
    %c0_3 = arith.constant 0 : index
    %0 = vector.load %arg3[%c0, %c0_0, %c0_1, %c0_2, %c0_3] : memref<1x1x7x8x8xbf16, #tpu.memory_space<vmem>>, vector<1x1x7x1x8xbf16>
    %1 = vector.shape_cast %0 : vector<1x1x7x1x8xbf16> to vector<7x8xbf16>
    %c0_4 = arith.constant 0 : index
    %c0_5 = arith.constant 0 : index
    %c0_6 = arith.constant 0 : index
    %2 = vector.load %arg4[%c0_4, %c0_5, %c0_6] : memref<1x16x7xbf16, #tpu.memory_space<vmem>>, vector<1x16x7xbf16>
    %3 = vector.shape_cast %2 : vector<1x16x7xbf16> to vector<16x7xbf16>
    %c0_7 = arith.constant 0 : index
    %c0_8 = arith.constant 0 : index
    %c0_9 = arith.constant 0 : index
    %4 = vector.load %arg5[%c0_7, %c0_8, %c0_9] : memref<1x16x1xf32, #tpu.memory_space<vmem>>, vector<1x16x1xf32>
    %5 = vector.shape_cast %4 : vector<1x16x1xf32> to vector<16x1xf32>
    %cst = arith.constant dense<0.000000e+00> : vector<16x8xf32>
    %6 = tpu.matmul %3, %1, %cst {dimension_numbers = #tpu.dot_dimension_numbers<[1], [0], [0], [1], [0, 0, 1, 1], [], []>} : vector<16x7xbf16>, vector<7x8xbf16>, vector<16x8xf32> -> vector<16x8xf32>
    %7 = vector.broadcast %5 : vector<16x1xf32> to vector<16x8xf32>
    %8 = arith.addf %6, %7 : vector<16x8xf32>
    %cst_10 = arith.constant 0.000000e+00 : f32
    %9 = vector.broadcast %cst_10 : f32 to vector<16x8xf32>
    %10 = arith.maximumf %8, %9 : vector<16x8xf32>
    %11 = arith.truncf %10 : vector<16x8xf32> to vector<16x8xbf16>
    %c0_11 = arith.constant 0 : index
    %c0_12 = arith.constant 0 : index
    %c0_13 = arith.constant 0 : index
    %12 = vector.load %arg6[%c0_11, %c0_12, %c0_13] : memref<1x32x16xbf16, #tpu.memory_space<vmem>>, vector<1x32x16xbf16>
    %13 = vector.shape_cast %12 : vector<1x32x16xbf16> to vector<32x16xbf16>
    %c0_14 = arith.constant 0 : index
    %c0_15 = arith.constant 0 : index
    %c0_16 = arith.constant 0 : index
    %14 = vector.load %arg7[%c0_14, %c0_15, %c0_16] : memref<1x32x1xf32, #tpu.memory_space<vmem>>, vector<1x32x1xf32>
    %15 = vector.shape_cast %14 : vector<1x32x1xf32> to vector<32x1xf32>
    %cst_17 = arith.constant dense<0.000000e+00> : vector<32x8xf32>
    %16 = tpu.matmul %13, %11, %cst_17 {dimension_numbers = #tpu.dot_dimension_numbers<[1], [0], [0], [1], [0, 0, 1, 1], [], []>} : vector<32x16xbf16>, vector<16x8xbf16>, vector<32x8xf32> -> vector<32x8xf32>
    %17 = vector.broadcast %15 : vector<32x1xf32> to vector<32x8xf32>
    %18 = arith.addf %16, %17 : vector<32x8xf32>
    %cst_18 = arith.constant 0.000000e+00 : f32
    %19 = vector.broadcast %cst_18 : f32 to vector<32x8xf32>
    %20 = arith.maximumf %18, %19 : vector<32x8xf32>
    %c0_19 = arith.constant 0 : index
    %c0_20 = arith.constant 0 : index
    %c0_21 = arith.constant 0 : index
    %c1 = arith.constant 1 : index
    %c0_22 = arith.constant 0 : index
    %21 = vector.load %arg3[%c0_19, %c0_20, %c0_21, %c1, %c0_22] : memref<1x1x7x8x8xbf16, #tpu.memory_space<vmem>>, vector<1x1x7x1x8xbf16>
    %22 = vector.shape_cast %21 : vector<1x1x7x1x8xbf16> to vector<7x8xbf16>
    %c0_23 = arith.constant 0 : index
    %c0_24 = arith.constant 0 : index
    %c0_25 = arith.constant 0 : index
    %23 = vector.load %arg4[%c0_23, %c0_24, %c0_25] : memref<1x16x7xbf16, #tpu.memory_space<vmem>>, vector<1x16x7xbf16>
    %24 = vector.shape_cast %23 : vector<1x16x7xbf16> to vector<16x7xbf16>
    %c0_26 = arith.constant 0 : index
    %c0_27 = arith.constant 0 : index
    %c0_28 = arith.constant 0 : index
    %25 = vector.load %arg5[%c0_26, %c0_27, %c0_28] : memref<1x16x1xf32, #tpu.memory_space<vmem>>, vector<1x16x1xf32>
    %26 = vector.shape_cast %25 : vector<1x16x1xf32> to vector<16x1xf32>
    %cst_29 = arith.constant dense<0.000000e+00> : vector<16x8xf32>
    %27 = tpu.matmul %24, %22, %cst_29 {dimension_numbers = #tpu.dot_dimension_numbers<[1], [0], [0], [1], [0, 0, 1, 1], [], []>} : vector<16x7xbf16>, vector<7x8xbf16>, vector<16x8xf32> -> vector<16x8xf32>
    %28 = vector.broadcast %26 : vector<16x1xf32> to vector<16x8xf32>
    %29 = arith.addf %27, %28 : vector<16x8xf32>
    %cst_30 = arith.constant 0.000000e+00 : f32
    %30 = vector.broadcast %cst_30 : f32 to vector<16x8xf32>
    %31 = arith.maximumf %29, %30 : vector<16x8xf32>
    %32 = arith.truncf %31 : vector<16x8xf32> to vector<16x8xbf16>
    %c0_31 = arith.constant 0 : index
    %c0_32 = arith.constant 0 : index
    %c0_33 = arith.constant 0 : index
    %33 = vector.load %arg6[%c0_31, %c0_32, %c0_33] : memref<1x32x16xbf16, #tpu.memory_space<vmem>>, vector<1x32x16xbf16>
    %34 = vector.shape_cast %33 : vector<1x32x16xbf16> to vector<32x16xbf16>
    %c0_34 = arith.constant 0 : index
    %c0_35 = arith.constant 0 : index
    %c0_36 = arith.constant 0 : index
    %35 = vector.load %arg7[%c0_34, %c0_35, %c0_36] : memref<1x32x1xf32, #tpu.memory_space<vmem>>, vector<1x32x1xf32>
    %36 = vector.shape_cast %35 : vector<1x32x1xf32> to vector<32x1xf32>
    %cst_37 = arith.constant dense<0.000000e+00> : vector<32x8xf32>
    %37 = tpu.matmul %34, %32, %cst_37 {dimension_numbers = #tpu.dot_dimension_numbers<[1], [0], [0], [1], [0, 0, 1, 1], [], []>} : vector<32x16xbf16>, vector<16x8xbf16>, vector<32x8xf32> -> vector<32x8xf32>
    %38 = vector.broadcast %36 : vector<32x1xf32> to vector<32x8xf32>
    %39 = arith.addf %37, %38 : vector<32x8xf32>
    %cst_38 = arith.constant 0.000000e+00 : f32
    %40 = vector.broadcast %cst_38 : f32 to vector<32x8xf32>
    %41 = arith.maximumf %39, %40 : vector<32x8xf32>
    %42 = arith.maximumf %20, %41 : vector<32x8xf32>
    %c0_39 = arith.constant 0 : index
    %c0_40 = arith.constant 0 : index
    %c0_41 = arith.constant 0 : index
    %c2 = arith.constant 2 : index
    %c0_42 = arith.constant 0 : index
    %43 = vector.load %arg3[%c0_39, %c0_40, %c0_41, %c2, %c0_42] : memref<1x1x7x8x8xbf16, #tpu.memory_space<vmem>>, vector<1x1x7x1x8xbf16>
    %44 = vector.shape_cast %43 : vector<1x1x7x1x8xbf16> to vector<7x8xbf16>
    %c0_43 = arith.constant 0 : index
    %c0_44 = arith.constant 0 : index
    %c0_45 = arith.constant 0 : index
    %45 = vector.load %arg4[%c0_43, %c0_44, %c0_45] : memref<1x16x7xbf16, #tpu.memory_space<vmem>>, vector<1x16x7xbf16>
    %46 = vector.shape_cast %45 : vector<1x16x7xbf16> to vector<16x7xbf16>
    %c0_46 = arith.constant 0 : index
    %c0_47 = arith.constant 0 : index
    %c0_48 = arith.constant 0 : index
    %47 = vector.load %arg5[%c0_46, %c0_47, %c0_48] : memref<1x16x1xf32, #tpu.memory_space<vmem>>, vector<1x16x1xf32>
    %48 = vector.shape_cast %47 : vector<1x16x1xf32> to vector<16x1xf32>
    %cst_49 = arith.constant dense<0.000000e+00> : vector<16x8xf32>
    %49 = tpu.matmul %46, %44, %cst_49 {dimension_numbers = #tpu.dot_dimension_numbers<[1], [0], [0], [1], [0, 0, 1, 1], [], []>} : vector<16x7xbf16>, vector<7x8xbf16>, vector<16x8xf32> -> vector<16x8xf32>
    %50 = vector.broadcast %48 : vector<16x1xf32> to vector<16x8xf32>
    %51 = arith.addf %49, %50 : vector<16x8xf32>
    %cst_50 = arith.constant 0.000000e+00 : f32
    %52 = vector.broadcast %cst_50 : f32 to vector<16x8xf32>
    %53 = arith.maximumf %51, %52 : vector<16x8xf32>
    %54 = arith.truncf %53 : vector<16x8xf32> to vector<16x8xbf16>
    %c0_51 = arith.constant 0 : index
    %c0_52 = arith.constant 0 : index
    %c0_53 = arith.constant 0 : index
    %55 = vector.load %arg6[%c0_51, %c0_52, %c0_53] : memref<1x32x16xbf16, #tpu.memory_space<vmem>>, vector<1x32x16xbf16>
    %56 = vector.shape_cast %55 : vector<1x32x16xbf16> to vector<32x16xbf16>
    %c0_54 = arith.constant 0 : index
    %c0_55 = arith.constant 0 : index
    %c0_56 = arith.constant 0 : index
    %57 = vector.load %arg7[%c0_54, %c0_55, %c0_56] : memref<1x32x1xf32, #tpu.memory_space<vmem>>, vector<1x32x1xf32>
    %58 = vector.shape_cast %57 : vector<1x32x1xf32> to vector<32x1xf32>
    %cst_57 = arith.constant dense<0.000000e+00> : vector<32x8xf32>
    %59 = tpu.matmul %56, %54, %cst_57 {dimension_numbers = #tpu.dot_dimension_numbers<[1], [0], [0], [1], [0, 0, 1, 1], [], []>} : vector<32x16xbf16>, vector<16x8xbf16>, vector<32x8xf32> -> vector<32x8xf32>
    %60 = vector.broadcast %58 : vector<32x1xf32> to vector<32x8xf32>
    %61 = arith.addf %59, %60 : vector<32x8xf32>
    %cst_58 = arith.constant 0.000000e+00 : f32
    %62 = vector.broadcast %cst_58 : f32 to vector<32x8xf32>
    %63 = arith.maximumf %61, %62 : vector<32x8xf32>
    %64 = arith.maximumf %42, %63 : vector<32x8xf32>
    %c0_59 = arith.constant 0 : index
    %c0_60 = arith.constant 0 : index
    %c0_61 = arith.constant 0 : index
    %c3 = arith.constant 3 : index
    %c0_62 = arith.constant 0 : index
    %65 = vector.load %arg3[%c0_59, %c0_60, %c0_61, %c3, %c0_62] : memref<1x1x7x8x8xbf16, #tpu.memory_space<vmem>>, vector<1x1x7x1x8xbf16>
    %66 = vector.shape_cast %65 : vector<1x1x7x1x8xbf16> to vector<7x8xbf16>
    %c0_63 = arith.constant 0 : index
    %c0_64 = arith.constant 0 : index
    %c0_65 = arith.constant 0 : index
    %67 = vector.load %arg4[%c0_63, %c0_64, %c0_65] : memref<1x16x7xbf16, #tpu.memory_space<vmem>>, vector<1x16x7xbf16>
    %68 = vector.shape_cast %67 : vector<1x16x7xbf16> to vector<16x7xbf16>
    %c0_66 = arith.constant 0 : index
    %c0_67 = arith.constant 0 : index
    %c0_68 = arith.constant 0 : index
    %69 = vector.load %arg5[%c0_66, %c0_67, %c0_68] : memref<1x16x1xf32, #tpu.memory_space<vmem>>, vector<1x16x1xf32>
    %70 = vector.shape_cast %69 : vector<1x16x1xf32> to vector<16x1xf32>
    %cst_69 = arith.constant dense<0.000000e+00> : vector<16x8xf32>
    %71 = tpu.matmul %68, %66, %cst_69 {dimension_numbers = #tpu.dot_dimension_numbers<[1], [0], [0], [1], [0, 0, 1, 1], [], []>} : vector<16x7xbf16>, vector<7x8xbf16>, vector<16x8xf32> -> vector<16x8xf32>
    %72 = vector.broadcast %70 : vector<16x1xf32> to vector<16x8xf32>
    %73 = arith.addf %71, %72 : vector<16x8xf32>
    %cst_70 = arith.constant 0.000000e+00 : f32
    %74 = vector.broadcast %cst_70 : f32 to vector<16x8xf32>
    %75 = arith.maximumf %73, %74 : vector<16x8xf32>
    %76 = arith.truncf %75 : vector<16x8xf32> to vector<16x8xbf16>
    %c0_71 = arith.constant 0 : index
    %c0_72 = arith.constant 0 : index
    %c0_73 = arith.constant 0 : index
    %77 = vector.load %arg6[%c0_71, %c0_72, %c0_73] : memref<1x32x16xbf16, #tpu.memory_space<vmem>>, vector<1x32x16xbf16>
    %78 = vector.shape_cast %77 : vector<1x32x16xbf16> to vector<32x16xbf16>
    %c0_74 = arith.constant 0 : index
    %c0_75 = arith.constant 0 : index
    %c0_76 = arith.constant 0 : index
    %79 = vector.load %arg7[%c0_74, %c0_75, %c0_76] : memref<1x32x1xf32, #tpu.memory_space<vmem>>, vector<1x32x1xf32>
    %80 = vector.shape_cast %79 : vector<1x32x1xf32> to vector<32x1xf32>
    %cst_77 = arith.constant dense<0.000000e+00> : vector<32x8xf32>
    %81 = tpu.matmul %78, %76, %cst_77 {dimension_numbers = #tpu.dot_dimension_numbers<[1], [0], [0], [1], [0, 0, 1, 1], [], []>} : vector<32x16xbf16>, vector<16x8xbf16>, vector<32x8xf32> -> vector<32x8xf32>
    %82 = vector.broadcast %80 : vector<32x1xf32> to vector<32x8xf32>
    %83 = arith.addf %81, %82 : vector<32x8xf32>
    %cst_78 = arith.constant 0.000000e+00 : f32
    %84 = vector.broadcast %cst_78 : f32 to vector<32x8xf32>
    %85 = arith.maximumf %83, %84 : vector<32x8xf32>
    %86 = arith.maximumf %64, %85 : vector<32x8xf32>
    %c0_79 = arith.constant 0 : index
    %c0_80 = arith.constant 0 : index
    %c0_81 = arith.constant 0 : index
    %c4 = arith.constant 4 : index
    %c0_82 = arith.constant 0 : index
    %87 = vector.load %arg3[%c0_79, %c0_80, %c0_81, %c4, %c0_82] : memref<1x1x7x8x8xbf16, #tpu.memory_space<vmem>>, vector<1x1x7x1x8xbf16>
    %88 = vector.shape_cast %87 : vector<1x1x7x1x8xbf16> to vector<7x8xbf16>
    %c0_83 = arith.constant 0 : index
    %c0_84 = arith.constant 0 : index
    %c0_85 = arith.constant 0 : index
    %89 = vector.load %arg4[%c0_83, %c0_84, %c0_85] : memref<1x16x7xbf16, #tpu.memory_space<vmem>>, vector<1x16x7xbf16>
    %90 = vector.shape_cast %89 : vector<1x16x7xbf16> to vector<16x7xbf16>
    %c0_86 = arith.constant 0 : index
    %c0_87 = arith.constant 0 : index
    %c0_88 = arith.constant 0 : index
    %91 = vector.load %arg5[%c0_86, %c0_87, %c0_88] : memref<1x16x1xf32, #tpu.memory_space<vmem>>, vector<1x16x1xf32>
    %92 = vector.shape_cast %91 : vector<1x16x1xf32> to vector<16x1xf32>
    %cst_89 = arith.constant dense<0.000000e+00> : vector<16x8xf32>
    %93 = tpu.matmul %90, %88, %cst_89 {dimension_numbers = #tpu.dot_dimension_numbers<[1], [0], [0], [1], [0, 0, 1, 1], [], []>} : vector<16x7xbf16>, vector<7x8xbf16>, vector<16x8xf32> -> vector<16x8xf32>
    %94 = vector.broadcast %92 : vector<16x1xf32> to vector<16x8xf32>
    %95 = arith.addf %93, %94 : vector<16x8xf32>
    %cst_90 = arith.constant 0.000000e+00 : f32
    %96 = vector.broadcast %cst_90 : f32 to vector<16x8xf32>
    %97 = arith.maximumf %95, %96 : vector<16x8xf32>
    %98 = arith.truncf %97 : vector<16x8xf32> to vector<16x8xbf16>
    %c0_91 = arith.constant 0 : index
    %c0_92 = arith.constant 0 : index
    %c0_93 = arith.constant 0 : index
    %99 = vector.load %arg6[%c0_91, %c0_92, %c0_93] : memref<1x32x16xbf16, #tpu.memory_space<vmem>>, vector<1x32x16xbf16>
    %100 = vector.shape_cast %99 : vector<1x32x16xbf16> to vector<32x16xbf16>
    %c0_94 = arith.constant 0 : index
    %c0_95 = arith.constant 0 : index
    %c0_96 = arith.constant 0 : index
    %101 = vector.load %arg7[%c0_94, %c0_95, %c0_96] : memref<1x32x1xf32, #tpu.memory_space<vmem>>, vector<1x32x1xf32>
    %102 = vector.shape_cast %101 : vector<1x32x1xf32> to vector<32x1xf32>
    %cst_97 = arith.constant dense<0.000000e+00> : vector<32x8xf32>
    %103 = tpu.matmul %100, %98, %cst_97 {dimension_numbers = #tpu.dot_dimension_numbers<[1], [0], [0], [1], [0, 0, 1, 1], [], []>} : vector<32x16xbf16>, vector<16x8xbf16>, vector<32x8xf32> -> vector<32x8xf32>
    %104 = vector.broadcast %102 : vector<32x1xf32> to vector<32x8xf32>
    %105 = arith.addf %103, %104 : vector<32x8xf32>
    %cst_98 = arith.constant 0.000000e+00 : f32
    %106 = vector.broadcast %cst_98 : f32 to vector<32x8xf32>
    %107 = arith.maximumf %105, %106 : vector<32x8xf32>
    %108 = arith.maximumf %86, %107 : vector<32x8xf32>
    %c0_99 = arith.constant 0 : index
    %c0_100 = arith.constant 0 : index
    %c0_101 = arith.constant 0 : index
    %c5 = arith.constant 5 : index
    %c0_102 = arith.constant 0 : index
    %109 = vector.load %arg3[%c0_99, %c0_100, %c0_101, %c5, %c0_102] : memref<1x1x7x8x8xbf16, #tpu.memory_space<vmem>>, vector<1x1x7x1x8xbf16>
    %110 = vector.shape_cast %109 : vector<1x1x7x1x8xbf16> to vector<7x8xbf16>
    %c0_103 = arith.constant 0 : index
    %c0_104 = arith.constant 0 : index
    %c0_105 = arith.constant 0 : index
    %111 = vector.load %arg4[%c0_103, %c0_104, %c0_105] : memref<1x16x7xbf16, #tpu.memory_space<vmem>>, vector<1x16x7xbf16>
    %112 = vector.shape_cast %111 : vector<1x16x7xbf16> to vector<16x7xbf16>
    %c0_106 = arith.constant 0 : index
    %c0_107 = arith.constant 0 : index
    %c0_108 = arith.constant 0 : index
    %113 = vector.load %arg5[%c0_106, %c0_107, %c0_108] : memref<1x16x1xf32, #tpu.memory_space<vmem>>, vector<1x16x1xf32>
    %114 = vector.shape_cast %113 : vector<1x16x1xf32> to vector<16x1xf32>
    %cst_109 = arith.constant dense<0.000000e+00> : vector<16x8xf32>
    %115 = tpu.matmul %112, %110, %cst_109 {dimension_numbers = #tpu.dot_dimension_numbers<[1], [0], [0], [1], [0, 0, 1, 1], [], []>} : vector<16x7xbf16>, vector<7x8xbf16>, vector<16x8xf32> -> vector<16x8xf32>
    %116 = vector.broadcast %114 : vector<16x1xf32> to vector<16x8xf32>
    %117 = arith.addf %115, %116 : vector<16x8xf32>
    %cst_110 = arith.constant 0.000000e+00 : f32
    %118 = vector.broadcast %cst_110 : f32 to vector<16x8xf32>
    %119 = arith.maximumf %117, %118 : vector<16x8xf32>
    %120 = arith.truncf %119 : vector<16x8xf32> to vector<16x8xbf16>
    %c0_111 = arith.constant 0 : index
    %c0_112 = arith.constant 0 : index
    %c0_113 = arith.constant 0 : index
    %121 = vector.load %arg6[%c0_111, %c0_112, %c0_113] : memref<1x32x16xbf16, #tpu.memory_space<vmem>>, vector<1x32x16xbf16>
    %122 = vector.shape_cast %121 : vector<1x32x16xbf16> to vector<32x16xbf16>
    %c0_114 = arith.constant 0 : index
    %c0_115 = arith.constant 0 : index
    %c0_116 = arith.constant 0 : index
    %123 = vector.load %arg7[%c0_114, %c0_115, %c0_116] : memref<1x32x1xf32, #tpu.memory_space<vmem>>, vector<1x32x1xf32>
    %124 = vector.shape_cast %123 : vector<1x32x1xf32> to vector<32x1xf32>
    %cst_117 = arith.constant dense<0.000000e+00> : vector<32x8xf32>
    %125 = tpu.matmul %122, %120, %cst_117 {dimension_numbers = #tpu.dot_dimension_numbers<[1], [0], [0], [1], [0, 0, 1, 1], [], []>} : vector<32x16xbf16>, vector<16x8xbf16>, vector<32x8xf32> -> vector<32x8xf32>
    %126 = vector.broadcast %124 : vector<32x1xf32> to vector<32x8xf32>
    %127 = arith.addf %125, %126 : vector<32x8xf32>
    %cst_118 = arith.constant 0.000000e+00 : f32
    %128 = vector.broadcast %cst_118 : f32 to vector<32x8xf32>
    %129 = arith.maximumf %127, %128 : vector<32x8xf32>
    %130 = arith.maximumf %108, %129 : vector<32x8xf32>
    %c0_119 = arith.constant 0 : index
    %c0_120 = arith.constant 0 : index
    %c0_121 = arith.constant 0 : index
    %c6 = arith.constant 6 : index
    %c0_122 = arith.constant 0 : index
    %131 = vector.load %arg3[%c0_119, %c0_120, %c0_121, %c6, %c0_122] : memref<1x1x7x8x8xbf16, #tpu.memory_space<vmem>>, vector<1x1x7x1x8xbf16>
    %132 = vector.shape_cast %131 : vector<1x1x7x1x8xbf16> to vector<7x8xbf16>
    %c0_123 = arith.constant 0 : index
    %c0_124 = arith.constant 0 : index
    %c0_125 = arith.constant 0 : index
    %133 = vector.load %arg4[%c0_123, %c0_124, %c0_125] : memref<1x16x7xbf16, #tpu.memory_space<vmem>>, vector<1x16x7xbf16>
    %134 = vector.shape_cast %133 : vector<1x16x7xbf16> to vector<16x7xbf16>
    %c0_126 = arith.constant 0 : index
    %c0_127 = arith.constant 0 : index
    %c0_128 = arith.constant 0 : index
    %135 = vector.load %arg5[%c0_126, %c0_127, %c0_128] : memref<1x16x1xf32, #tpu.memory_space<vmem>>, vector<1x16x1xf32>
    %136 = vector.shape_cast %135 : vector<1x16x1xf32> to vector<16x1xf32>
    %cst_129 = arith.constant dense<0.000000e+00> : vector<16x8xf32>
    %137 = tpu.matmul %134, %132, %cst_129 {dimension_numbers = #tpu.dot_dimension_numbers<[1], [0], [0], [1], [0, 0, 1, 1], [], []>} : vector<16x7xbf16>, vector<7x8xbf16>, vector<16x8xf32> -> vector<16x8xf32>
    %138 = vector.broadcast %136 : vector<16x1xf32> to vector<16x8xf32>
    %139 = arith.addf %137, %138 : vector<16x8xf32>
    %cst_130 = arith.constant 0.000000e+00 : f32
    %140 = vector.broadcast %cst_130 : f32 to vector<16x8xf32>
    %141 = arith.maximumf %139, %140 : vector<16x8xf32>
    %142 = arith.truncf %141 : vector<16x8xf32> to vector<16x8xbf16>
    %c0_131 = arith.constant 0 : index
    %c0_132 = arith.constant 0 : index
    %c0_133 = arith.constant 0 : index
    %143 = vector.load %arg6[%c0_131, %c0_132, %c0_133] : memref<1x32x16xbf16, #tpu.memory_space<vmem>>, vector<1x32x16xbf16>
    %144 = vector.shape_cast %143 : vector<1x32x16xbf16> to vector<32x16xbf16>
    %c0_134 = arith.constant 0 : index
    %c0_135 = arith.constant 0 : index
    %c0_136 = arith.constant 0 : index
    %145 = vector.load %arg7[%c0_134, %c0_135, %c0_136] : memref<1x32x1xf32, #tpu.memory_space<vmem>>, vector<1x32x1xf32>
    %146 = vector.shape_cast %145 : vector<1x32x1xf32> to vector<32x1xf32>
    %cst_137 = arith.constant dense<0.000000e+00> : vector<32x8xf32>
    %147 = tpu.matmul %144, %142, %cst_137 {dimension_numbers = #tpu.dot_dimension_numbers<[1], [0], [0], [1], [0, 0, 1, 1], [], []>} : vector<32x16xbf16>, vector<16x8xbf16>, vector<32x8xf32> -> vector<32x8xf32>
    %148 = vector.broadcast %146 : vector<32x1xf32> to vector<32x8xf32>
    %149 = arith.addf %147, %148 : vector<32x8xf32>
    %cst_138 = arith.constant 0.000000e+00 : f32
    %150 = vector.broadcast %cst_138 : f32 to vector<32x8xf32>
    %151 = arith.maximumf %149, %150 : vector<32x8xf32>
    %152 = arith.maximumf %130, %151 : vector<32x8xf32>
    %c0_139 = arith.constant 0 : index
    %c0_140 = arith.constant 0 : index
    %c0_141 = arith.constant 0 : index
    %c7 = arith.constant 7 : index
    %c0_142 = arith.constant 0 : index
    %153 = vector.load %arg3[%c0_139, %c0_140, %c0_141, %c7, %c0_142] : memref<1x1x7x8x8xbf16, #tpu.memory_space<vmem>>, vector<1x1x7x1x8xbf16>
    %154 = vector.shape_cast %153 : vector<1x1x7x1x8xbf16> to vector<7x8xbf16>
    %c0_143 = arith.constant 0 : index
    %c0_144 = arith.constant 0 : index
    %c0_145 = arith.constant 0 : index
    %155 = vector.load %arg4[%c0_143, %c0_144, %c0_145] : memref<1x16x7xbf16, #tpu.memory_space<vmem>>, vector<1x16x7xbf16>
    %156 = vector.shape_cast %155 : vector<1x16x7xbf16> to vector<16x7xbf16>
    %c0_146 = arith.constant 0 : index
    %c0_147 = arith.constant 0 : index
    %c0_148 = arith.constant 0 : index
    %157 = vector.load %arg5[%c0_146, %c0_147, %c0_148] : memref<1x16x1xf32, #tpu.memory_space<vmem>>, vector<1x16x1xf32>
    %158 = vector.shape_cast %157 : vector<1x16x1xf32> to vector<16x1xf32>
    %cst_149 = arith.constant dense<0.000000e+00> : vector<16x8xf32>
    %159 = tpu.matmul %156, %154, %cst_149 {dimension_numbers = #tpu.dot_dimension_numbers<[1], [0], [0], [1], [0, 0, 1, 1], [], []>} : vector<16x7xbf16>, vector<7x8xbf16>, vector<16x8xf32> -> vector<16x8xf32>
    %160 = vector.broadcast %158 : vector<16x1xf32> to vector<16x8xf32>
    %161 = arith.addf %159, %160 : vector<16x8xf32>
    %cst_150 = arith.constant 0.000000e+00 : f32
    %162 = vector.broadcast %cst_150 : f32 to vector<16x8xf32>
    %163 = arith.maximumf %161, %162 : vector<16x8xf32>
    %164 = arith.truncf %163 : vector<16x8xf32> to vector<16x8xbf16>
    %c0_151 = arith.constant 0 : index
    %c0_152 = arith.constant 0 : index
    %c0_153 = arith.constant 0 : index
    %165 = vector.load %arg6[%c0_151, %c0_152, %c0_153] : memref<1x32x16xbf16, #tpu.memory_space<vmem>>, vector<1x32x16xbf16>
    %166 = vector.shape_cast %165 : vector<1x32x16xbf16> to vector<32x16xbf16>
    %c0_154 = arith.constant 0 : index
    %c0_155 = arith.constant 0 : index
    %c0_156 = arith.constant 0 : index
    %167 = vector.load %arg7[%c0_154, %c0_155, %c0_156] : memref<1x32x1xf32, #tpu.memory_space<vmem>>, vector<1x32x1xf32>
    %168 = vector.shape_cast %167 : vector<1x32x1xf32> to vector<32x1xf32>
    %cst_157 = arith.constant dense<0.000000e+00> : vector<32x8xf32>
    %169 = tpu.matmul %166, %164, %cst_157 {dimension_numbers = #tpu.dot_dimension_numbers<[1], [0], [0], [1], [0, 0, 1, 1], [], []>} : vector<32x16xbf16>, vector<16x8xbf16>, vector<32x8xf32> -> vector<32x8xf32>
    %170 = vector.broadcast %168 : vector<32x1xf32> to vector<32x8xf32>
    %171 = arith.addf %169, %170 : vector<32x8xf32>
    %cst_158 = arith.constant 0.000000e+00 : f32
    %172 = vector.broadcast %cst_158 : f32 to vector<32x8xf32>
    %173 = arith.maximumf %171, %172 : vector<32x8xf32>
    %174 = arith.maximumf %152, %173 : vector<32x8xf32>
    %c0_159 = arith.constant 0 : index
    %c0_160 = arith.constant 0 : index
    %c0_161 = arith.constant 0 : index
    %c0_162 = arith.constant 0 : index
    %175 = vector.load %arg8[%c0_159, %c0_160, %c0_161, %c0_162] : memref<1x1x32x8xf32, #tpu.memory_space<vmem>>, vector<1x1x32x8xf32>
    %176 = vector.shape_cast %175 : vector<1x1x32x8xf32> to vector<32x8xf32>
    %177 = vector.shape_cast %174 : vector<32x8xf32> to vector<1x1x32x8xf32>
    tpu.vector_store %arg8[%c0_159, %c0_160, %c0_161, %c0_162], %177 {strides = array<i32>} : memref<1x1x32x8xf32, #tpu.memory_space<vmem>>, vector<1x1x32x8xf32>,
    return
  }
  func.func @transform_0(%arg0: i32, %arg1: i32, %arg2: i32) -> (i32, i32, i32, i32, i32) {
    %c0_i32 = arith.constant 0 : i32
    %c0_i32_0 = arith.constant 0 : i32
    %c0_i32_1 = arith.constant 0 : i32
    return %arg0, %arg1, %c0_i32, %c0_i32_0, %arg2 : i32, i32, i32, i32, i32
  }
  func.func @transform_1(%arg0: i32, %arg1: i32, %arg2: i32) -> (i32, i32, i32) {
    %c0_i32 = arith.constant 0 : i32
    %c0_i32_0 = arith.constant 0 : i32
    %c0_i32_1 = arith.constant 0 : i32
    return %arg0, %c0_i32, %c0_i32_0 : i32, i32, i32
  }
  func.func @transform_2(%arg0: i32, %arg1: i32, %arg2: i32) -> (i32, i32, i32) {
    %c0_i32 = arith.constant 0 : i32
    %c0_i32_0 = arith.constant 0 : i32
    %c0_i32_1 = arith.constant 0 : i32
    return %arg0, %c0_i32, %c0_i32_0 : i32, i32, i32
  }
  func.func @transform_3(%arg0: i32, %arg1: i32, %arg2: i32) -> (i32, i32, i32) {
    %c0_i32 = arith.constant 0 : i32
    %c0_i32_0 = arith.constant 0 : i32
    %c0_i32_1 = arith.constant 0 : i32
    return %arg0, %c0_i32, %c0_i32_0 : i32, i32, i32
  }
  func.func @transform_4(%arg0: i32, %arg1: i32, %arg2: i32) -> (i32, i32, i32) {
    %c0_i32 = arith.constant 0 : i32
    %c0_i32_0 = arith.constant 0 : i32
    %c0_i32_1 = arith.constant 0 : i32
    return %arg0, %c0_i32, %c0_i32_0 : i32, i32, i32
  }
  func.func @transform_5(%arg0: i32, %arg1: i32, %arg2: i32) -> (i32, i32, i32, i32) {
    %c0_i32 = arith.constant 0 : i32
    %c0_i32_0 = arith.constant 0 : i32
    return %arg0, %arg1, %c0_i32, %arg2 : i32, i32, i32, i32
  }
}

</mosaic_0001>

<llo_original>
// kernel: custom-call.12
$region0: #{custom-call.12}
  %s0 = inlined_call_operand.vmem [shape: f32[2,16], index: 0, kind: output, shape index: {}]

// kernel: point_sa_module_msg_forward.1
$region0: #{point_sa_module_msg_forward.1}
  #allocation0 [shape = 'u32[]', space=smem, size = 0x4, offset = 0x4, fixed_abs, tag = 'smem constant byte address 0x4 - core index']
  #allocation1 [shape = 'u32[144,128]{1,0:T(1,128)}', space=vmem, size = 0x12000, scoped, tag = 'internal scratch']
  %s0 = inlined_call_operand.vmem [shape: bf16[2,2,7,8,8], index: 0, kind: input, shape index: {}]
  %s1 = inlined_call_operand.vmem [shape: bf16[2,16,7], index: 1, kind: input, shape index: {}]
  %s2 = inlined_call_operand.vmem [shape: f32[2,16,1], index: 2, kind: input, shape index: {}]
  %s3 = inlined_call_operand.vmem [shape: bf16[2,32,16], index: 3, kind: input, shape index: {}]
  %s4 = inlined_call_operand.vmem [shape: f32[2,32,1], index: 4, kind: input, shape index: {}]
  %s5 = inlined_call_operand.vmem [shape: f32[2,2,32,8], index: 5, kind: output, shape index: {}]
  %s6 = sld [smem:[#allocation0]]
  $region53: #{point_sa_module_msg_forward.1} parent=0
    _
  %s8 = ssub.s32 1, %s6
  %s9 = scalar_select 0, %s8, %s6
  loop: start=0, step=1, limit=6
  $region2: #{point_sa_module_msg_forward.1} parent=0 // loop_pre_header
    _
  $region3: #{point_sa_module_msg_forward.1} parent=0 // loop_header
    %s11 = sphi 0, %s15
    %p12 = scmp.ge.s32.totalorder %s11, 6
    %s18 = sphi 0, %s37
    %s19 = sphi 0, %s33
    %s20 = sphi 0, %s29
    %s21 = sphi 0, %s18
    %s22 = sphi 0, %s19
    %s23 = sphi 0, %s20
    %s24 = sphi 0, %s21
    %s25 = sphi 0, %s22
    %s26 = sphi 0, %s23
    %s44 = sphi 0, %s46
    %s47 = sphi 0, %s44
    %s48 = sphi 0, %s47
    %s64 = sphi 0, %s48
    %s70 = sphi 0, %s72
    %s73 = sphi 0, %s70
    %s74 = sphi 0, %s73
    %s90 = sphi 0, %s74
    %s96 = sphi 0, %s98
    %s99 = sphi 0, %s96
    %s100 = sphi 0, %s99
    %s116 = sphi 0, %s100
    %s122 = sphi 0, %s124
    %s125 = sphi 0, %s122
    %s126 = sphi 0, %s125
    %s142 = sphi 0, %s126
    %s148 = sphi 0, %s150
    %s151 = sphi 0, %s148
    %s152 = sphi 0, %s151
    %s168 = sphi 0, %s152
    %s178 = sphi 0, %s180
    %s181 = sphi 0, %s178
    %s182 = sphi 0, %s181
    %s198 = sphi 0, %s182
  $region4: #{point_sa_module_msg_forward.1} parent=0 // loop_header_branch
    %14 = sbr.rel (%p12) target = $region8
  $region5: #{point_sa_module_msg_forward.1} parent=0 // loop_body
    %s16 = ssub.s32 %s11, 1
    %s17 = ssub.s32 %s11, 2
    %s27 = sadd.s32 1, %s20
    %p28 = scmp.ge.s32.totalorder %s27, 1
    %s29 = scalar_select %p28, 0, %s27
    %s30 = sadd.s32 1, %s19
    %s31 = scalar_select %p28, %s30, %s19
    %p32 = scmp.ge.s32.totalorder %s31, 2
    %s33 = scalar_select %p32, 0, %s31
    %s34 = sadd.s32 1, %s18
    %s35 = scalar_select %p32, %s34, %s18
    %p36 = scmp.ge.s32.totalorder %s35, 2
    %s37 = scalar_select %p36, 0, %s35
    %s38 = ssub.s32 %s18, %s37
    %s39 = ssub.s32 %s19, %s33
    %s40 = sor.u32 %s38, %s39
    %s41 = ssub.s32 %s20, %s29
    %s42 = sor.u32 %s40, %s41
    %p43 = scmp.eq.s32.totalorder %s42, 0
    %s45 = sadd.s32 %s44, 1
    %s46 = scalar_select %p43, %s44, %s45
    %p49 = pneg %p43
    %p50 = scmp.eq.s32.totalorder %s11, 3
    %p51 = por %p49, %p50
    %p52 = scmp.ne.s32.totalorder %s44, %s47
    %p53 = scmp.eq.s32.totalorder %s11, 0
    %p54 = por %p52, %p53
    %p55 = scmp.ne.s32.totalorder %s44, %s47
    %p56 = scmp.eq.s32.totalorder %s16, 3
    %p57 = por %p55, %p56
    %p58 = scmp.ne.s32.totalorder %s47, %s48
    %p59 = scmp.eq.s32.totalorder %s16, 0
    %p60 = por %p58, %p59
    %p61 = scmp.ne.s32.totalorder %s47, %s48
    %p62 = scmp.eq.s32.totalorder %s17, 3
    %p63 = por %p61, %p62
    %p65 = scmp.ne.s32.totalorder %s48, %s64
    %p66 = scmp.eq.s32.totalorder %s17, 0
    %p67 = por %p65, %p66
    %s68 = ssub.s32 %s18, %s37
    %p69 = scmp.eq.s32.totalorder %s68, 0
    %s71 = sadd.s32 %s70, 1
    %s72 = scalar_select %p69, %s70, %s71
    %p75 = pneg %p69
    %p76 = scmp.eq.s32.totalorder %s11, 3
    %p77 = por %p75, %p76
    %p78 = scmp.ne.s32.totalorder %s70, %s73
    %p79 = scmp.eq.s32.totalorder %s11, 0
    %p80 = por %p78, %p79
    %p81 = scmp.ne.s32.totalorder %s70, %s73
    %p82 = scmp.eq.s32.totalorder %s16, 3
    %p83 = por %p81, %p82
    %p84 = scmp.ne.s32.totalorder %s73, %s74
    %p85 = scmp.eq.s32.totalorder %s16, 0
    %p86 = por %p84, %p85
    %p87 = scmp.ne.s32.totalorder %s73, %s74
    %p88 = scmp.eq.s32.totalorder %s17, 3
    %p89 = por %p87, %p88
    %p91 = scmp.ne.s32.totalorder %s74, %s90
    %p92 = scmp.eq.s32.totalorder %s17, 0
    %p93 = por %p91, %p92
    %s94 = ssub.s32 %s18, %s37
    %p95 = scmp.eq.s32.totalorder %s94, 0
    %s97 = sadd.s32 %s96, 1
    %s98 = scalar_select %p95, %s96, %s97
    %p101 = pneg %p95
    %p102 = scmp.eq.s32.totalorder %s11, 3
    %p103 = por %p101, %p102
    %p104 = scmp.ne.s32.totalorder %s96, %s99
    %p105 = scmp.eq.s32.totalorder %s11, 0
    %p106 = por %p104, %p105
    %p107 = scmp.ne.s32.totalorder %s96, %s99
    %p108 = scmp.eq.s32.totalorder %s16, 3
    %p109 = por %p107, %p108
    %p110 = scmp.ne.s32.totalorder %s99, %s100
    %p111 = scmp.eq.s32.totalorder %s16, 0
    %p112 = por %p110, %p111
    %p113 = scmp.ne.s32.totalorder %s99, %s100
    %p114 = scmp.eq.s32.totalorder %s17, 3
    %p115 = por %p113, %p114
    %p117 = scmp.ne.s32.totalorder %s100, %s116
    %p118 = scmp.eq.s32.totalorder %s17, 0
    %p119 = por %p117, %p118
    %s120 = ssub.s32 %s18, %s37
    %p121 = scmp.eq.s32.totalorder %s120, 0
    %s123 = sadd.s32 %s122, 1
    %s124 = scalar_select %p121, %s122, %s123
    %p127 = pneg %p121
    %p128 = scmp.eq.s32.totalorder %s11, 3
    %p129 = por %p127, %p128
    %p130 = scmp.ne.s32.totalorder %s122, %s125
    %p131 = scmp.eq.s32.totalorder %s11, 0
    %p132 = por %p130, %p131
    %p133 = scmp.ne.s32.totalorder %s122, %s125
    %p134 = scmp.eq.s32.totalorder %s16, 3
    %p135 = por %p133, %p134
    %p136 = scmp.ne.s32.totalorder %s125, %s126
    %p137 = scmp.eq.s32.totalorder %s16, 0
    %p138 = por %p136, %p137
    %p139 = scmp.ne.s32.totalorder %s125, %s126
    %p140 = scmp.eq.s32.totalorder %s17, 3
    %p141 = por %p139, %p140
    %p143 = scmp.ne.s32.totalorder %s126, %s142
    %p144 = scmp.eq.s32.totalorder %s17, 0
    %p145 = por %p143, %p144
    %s146 = ssub.s32 %s18, %s37
    %p147 = scmp.eq.s32.totalorder %s146, 0
    %s149 = sadd.s32 %s148, 1
    %s150 = scalar_select %p147, %s148, %s149
    %p153 = pneg %p147
    %p154 = scmp.eq.s32.totalorder %s11, 3
    %p155 = por %p153, %p154
    %p156 = scmp.ne.s32.totalorder %s148, %s151
    %p157 = scmp.eq.s32.totalorder %s11, 0
    %p158 = por %p156, %p157
    %p159 = scmp.ne.s32.totalorder %s148, %s151
    %p160 = scmp.eq.s32.totalorder %s16, 3
    %p161 = por %p159, %p160
    %p162 = scmp.ne.s32.totalorder %s151, %s152
    %p163 = scmp.eq.s32.totalorder %s16, 0
    %p164 = por %p162, %p163
    %p165 = scmp.ne.s32.totalorder %s151, %s152
    %p166 = scmp.eq.s32.totalorder %s17, 3
    %p167 = por %p165, %p166
    %p169 = scmp.ne.s32.totalorder %s152, %s168
    %p170 = scmp.eq.s32.totalorder %s17, 0
    %p171 = por %p169, %p170
    %s172 = ssub.s32 %s18, %s37
    %s173 = ssub.s32 %s19, %s33
    %s174 = sor.u32 %s172, %s173
    %s175 = ssub.s32 %s20, %s29
    %s176 = sor.u32 %s174, %s175
    %p177 = scmp.eq.s32.totalorder %s176, 0
    %s179 = sadd.s32 %s178, 1
    %s180 = scalar_select %p177, %s178, %s179
    %p183 = pneg %p177
    %p184 = scmp.eq.s32.totalorder %s11, 3
    %p185 = por %p183, %p184
    %p186 = scmp.ne.s32.totalorder %s178, %s181
    %p187 = scmp.eq.s32.totalorder %s11, 0
    %p188 = por %p186, %p187
    %p189 = scmp.ne.s32.totalorder %s178, %s181
    %p190 = scmp.eq.s32.totalorder %s16, 3
    %p191 = por %p189, %p190
    %p192 = scmp.ne.s32.totalorder %s181, %s182
    %p193 = scmp.eq.s32.totalorder %s16, 0
    %p194 = por %p192, %p193
    %p195 = scmp.ne.s32.totalorder %s181, %s182
    %p196 = scmp.eq.s32.totalorder %s17, 3
    %p197 = por %p195, %p196
    %p199 = scmp.ne.s32.totalorder %s182, %s198
    %p200 = scmp.eq.s32.totalorder %s17, 0
    %p201 = por %p199, %p200
    %p202 = scmp.le.s32.totalorder 1, %s11
    %p203 = scmp.lt.s32.totalorder %s11, 5
    %p204 = pnand %p202, %p203
    %p205 = pneg %p204
    // Predicated region
    $region9: #{point_sa_module_msg_forward.1} parent=5 // pred_check
      _
    $region10: #{point_sa_module_msg_forward.1} parent=5 // pred_check_branch
      %207 = sbr.rel (%p204) target = $region12
    $region11: #{point_sa_module_msg_forward.1} parent=5 // pred_region
      %s208 = ssub.s32 %s11, 1
    $region12: #{point_sa_module_msg_forward.1} parent=5 // pred_fallthru
      _
    %p209 = scmp.lt.s32.totalorder %s11, 4
    // Predicated region
    $region13: #{point_sa_module_msg_forward.1} parent=5 // pred_check
      %p210 = pneg %p209
    $region14: #{point_sa_module_msg_forward.1} parent=5 // pred_check_branch
      %212 = sbr.rel (%p210) target = $region16
    $region15: #{point_sa_module_msg_forward.1} parent=5 // pred_region
      // Predicated region
      $region17: #{point_sa_module_msg_forward.1} parent=15 // pred_check
        %p213 = pneg %p54
      $region18: #{point_sa_module_msg_forward.1} parent=15 // pred_check_branch
        %215 = sbr.rel (%p213) target = $region20
      $region19: #{point_sa_module_msg_forward.1} parent=15 // pred_region
        %p216 = scmp.lt.s32.totalorder %s18, 1
        %s217 = scalar_select %p216, %s18, 1
        %p218 = scmp.lt.s32.totalorder %s19, 1
        %s219 = scalar_select %p218, %s19, 1
        %p220 = scmp.lt.s32.totalorder %s20, 0
        %s221 = scalar_select %p220, %s20, 0
        %s222 = smul.addr %s219, 7
        %s223 = sadd.s32 %s221, %s222
        %s224 = smul.addr %s217, 14
        %s225 = sadd.s32 %s223, %s224
        %s226 = smul.addr %s225, 4
        %s227 = scalar_lea.vmem %s0, %s226
      $region20: #{point_sa_module_msg_forward.1} parent=15 // pred_fallthru
        _
      // Predicated region
      $region21: #{point_sa_module_msg_forward.1} parent=15 // pred_check
        %p228 = pneg %p80
      $region22: #{point_sa_module_msg_forward.1} parent=15 // pred_check_branch
        %230 = sbr.rel (%p228) target = $region24
      $region23: #{point_sa_module_msg_forward.1} parent=15 // pred_region
        %p231 = scmp.lt.s32.totalorder %s18, 1
        %s232 = scalar_select %p231, %s18, 1
        %s233 = smul.addr %s232, 2
        %s234 = smul.addr %s233, 4
        %s235 = scalar_lea.vmem %s1, %s234
      $region24: #{point_sa_module_msg_forward.1} parent=15 // pred_fallthru
        _
      // Predicated region
      $region25: #{point_sa_module_msg_forward.1} parent=15 // pred_check
        %p236 = pneg %p106
      $region26: #{point_sa_module_msg_forward.1} parent=15 // pred_check_branch
        %238 = sbr.rel (%p236) target = $region28
      $region27: #{point_sa_module_msg_forward.1} parent=15 // pred_region
        %p239 = scmp.lt.s32.totalorder %s18, 1
        %s240 = scalar_select %p239, %s18, 1
        %s241 = smul.addr %s240, 2
        %s242 = smul.addr %s241, 8
        %s243 = scalar_lea.vmem %s2, %s242
      $region28: #{point_sa_module_msg_forward.1} parent=15 // pred_fallthru
        _
      // Predicated region
      $region29: #{point_sa_module_msg_forward.1} parent=15 // pred_check
        %p244 = pneg %p132
      $region30: #{point_sa_module_msg_forward.1} parent=15 // pred_check_branch
        %246 = sbr.rel (%p244) target = $region32
      $region31: #{point_sa_module_msg_forward.1} parent=15 // pred_region
        %p247 = scmp.lt.s32.totalorder %s18, 1
        %s248 = scalar_select %p247, %s18, 1
        %s249 = smul.addr %s248, 4
        %s250 = smul.addr %s249, 4
        %s251 = scalar_lea.vmem %s3, %s250
      $region32: #{point_sa_module_msg_forward.1} parent=15 // pred_fallthru
        _
      // Predicated region
      $region33: #{point_sa_module_msg_forward.1} parent=15 // pred_check
        %p252 = pneg %p158
      $region34: #{point_sa_module_msg_forward.1} parent=15 // pred_check_branch
        %254 = sbr.rel (%p252) target = $region36
      $region35: #{point_sa_module_msg_forward.1} parent=15 // pred_region
        %p255 = scmp.lt.s32.totalorder %s18, 1
        %s256 = scalar_select %p255, %s18, 1
        %s257 = smul.addr %s256, 4
        %s258 = smul.addr %s257, 8
        %s259 = scalar_lea.vmem %s4, %s258
      $region36: #{point_sa_module_msg_forward.1} parent=15 // pred_fallthru
        _
    $region16: #{point_sa_module_msg_forward.1} parent=5 // pred_fallthru
      _
    %p260 = scmp.le.s32.totalorder 1, %s11
    %p261 = scmp.lt.s32.totalorder %s11, 5
    %p262 = pnand %p260, %p261
    %p263 = pneg %p262
    // Predicated region
    $region37: #{point_sa_module_msg_forward.1} parent=5 // pred_check
      _
    $region38: #{point_sa_module_msg_forward.1} parent=5 // pred_check_branch
      %265 = sbr.rel (%p262) target = $region40
    $region39: #{point_sa_module_msg_forward.1} parent=5 // pred_region
      %s266 = ssub.s32 %s11, 1
      %p267 = scmp.lt.s32.totalorder %s21, 1
      %s268 = scalar_select %p267, %s21, 1
      %p269 = scmp.lt.s32.totalorder %s22, 1
      %s270 = scalar_select %p269, %s22, 1
      %p271 = scmp.lt.s32.totalorder %s23, 0
      %s272 = scalar_select %p271, %s23, 0
      %s273 = smul.addr %s270, 7
      %s274 = sadd.s32 %s272, %s273
      %s275 = smul.addr %s268, 14
      %s276 = sadd.s32 %s274, %s275
      %s277 = smul.addr %s276, 4
      %s278 = scalar_lea.vmem %s0, %s277
      %p279 = pneg %p60
      %p280 = pneg %p57
      %p281 = scmp.lt.s32.totalorder %s21, 1
      %s282 = scalar_select %p281, %s21, 1
      %s283 = smul.addr %s282, 2
      %s284 = smul.addr %s283, 4
      %s285 = scalar_lea.vmem %s1, %s284
      %p286 = pneg %p86
      %p287 = pneg %p83
      %p288 = scmp.lt.s32.totalorder %s21, 1
      %s289 = scalar_select %p288, %s21, 1
      %s290 = smul.addr %s289, 2
      %s291 = smul.addr %s290, 8
      %s292 = scalar_lea.vmem %s2, %s291
      %p293 = pneg %p112
      %p294 = pneg %p109
      %p295 = scmp.lt.s32.totalorder %s21, 1
      %s296 = scalar_select %p295, %s21, 1
      %s297 = smul.addr %s296, 4
      %s298 = smul.addr %s297, 4
      %s299 = scalar_lea.vmem %s3, %s298
      %p300 = pneg %p138
      %p301 = pneg %p135
      %p302 = scmp.lt.s32.totalorder %s21, 1
      %s303 = scalar_select %p302, %s21, 1
      %s304 = smul.addr %s303, 4
      %s305 = smul.addr %s304, 8
      %s306 = scalar_lea.vmem %s4, %s305
      %p307 = pneg %p164
      %p308 = pneg %p161
      %p309 = pneg %p194
      %p310 = pneg %p191
      %p311 = scmp.lt.s32.totalorder %s21, 1
      %s312 = scalar_select %p311, %s21, 1
      %p313 = scmp.lt.s32.totalorder %s22, 1
      %s314 = scalar_select %p313, %s22, 1
      %p315 = scmp.lt.s32.totalorder %s23, 0
      %s316 = scalar_select %p315, %s23, 0
      %s317 = smul.addr %s314, 4
      %s318 = sadd.s32 %s316, %s317
      %s319 = smul.addr %s312, 8
      %s320 = sadd.s32 %s318, %s319
      %s321 = smul.addr %s320, 8
      %s322 = scalar_lea.vmem %s5, %s321
      %p323 = scmp.lt.s32.totalorder %s21, 1
      %s324 = scalar_select %p323, %s21, 1
      %p325 = scmp.lt.s32.totalorder %s22, 1
      %s326 = scalar_select %p325, %s22, 1
      %p327 = scmp.lt.s32.totalorder %s23, 0
      %s328 = scalar_select %p327, %s23, 0
      %s329 = smul.addr %s326, 7
      %s330 = sadd.s32 %s328, %s329
      %s331 = smul.addr %s324, 14
      %s332 = sadd.s32 %s330, %s331
      %s333 = smul.addr %s332, 4
      %s334 = scalar_lea.vmem %s0, %s333
      %p335 = scmp.lt.s32.totalorder %s21, 1
      %s336 = scalar_select %p335, %s21, 1
      %s337 = smul.addr %s336, 2
      %s338 = smul.addr %s337, 4
      %s339 = scalar_lea.vmem %s1, %s338
      %p340 = scmp.lt.s32.totalorder %s21, 1
      %s341 = scalar_select %p340, %s21, 1
      %s342 = smul.addr %s341, 2
      %s343 = smul.addr %s342, 8
      %s344 = scalar_lea.vmem %s2, %s343
      %p345 = scmp.lt.s32.totalorder %s21, 1
      %s346 = scalar_select %p345, %s21, 1
      %s347 = smul.addr %s346, 4
      %s348 = smul.addr %s347, 4
      %s349 = scalar_lea.vmem %s3, %s348
      %p350 = scmp.lt.s32.totalorder %s21, 1
      %s351 = scalar_select %p350, %s21, 1
      %s352 = smul.addr %s351, 4
      %s353 = smul.addr %s352, 8
      %s354 = scalar_lea.vmem %s4, %s353
      %p355 = scmp.lt.s32.totalorder %s21, 1
      %s356 = scalar_select %p355, %s21, 1
      %p357 = scmp.lt.s32.totalorder %s22, 1
      %s358 = scalar_select %p357, %s22, 1
      %p359 = scmp.lt.s32.totalorder %s23, 0
      %s360 = scalar_select %p359, %s23, 0
      %s361 = smul.addr %s358, 4
      %s362 = sadd.s32 %s360, %s361
      %s363 = smul.addr %s356, 8
      %s364 = sadd.s32 %s362, %s363
      %s365 = smul.addr %s364, 8
      %s366 = scalar_lea.vmem %s5, %s365
      %v368 = vld [vmem:[%s334] sm:$0x1]
      %v369 = vld [vmem:[%s334 + $0x4] sm:$0x1]
      %v370 = vld [vmem:[%s334 + $0x8] sm:$0x1]
      %v371 = vld [vmem:[%s334 + $0xc] sm:$0x1]
      %v372 = vld [vmem:[%s334 + $0x10] sm:$0x1]
      %v373 = vld [vmem:[%s334 + $0x14] sm:$0x1]
      %v374 = vld [vmem:[%s334 + $0x18] sm:$0x1]
      %v375 = vld [vmem:[%s339] sm:$0xf]
      %v376 = vld [vmem:[%s339 + $0x4] sm:$0xf]
      %v377 = vld [vmem:[%s344] sm:$0xff]
      %v378 = vld [vmem:[%s344 + $0x8] sm:$0xff]
      %380 = vset.pattern.permute.xlu0 0
      %381 = vperm.xlu0 %380, %v377
      %v382 = vpop.permute.xlu0 %381
      %385 = vset.pattern.permute.xlu0 0
      %386 = vperm.xlu0 %385, %v378
      %v387 = vpop.permute.xlu0 %386
      %v391 = vunpack.c.l.b16 %v375
      %v392 = vunpack.c.l.b16 %v376
      %v393 = vpack.c.b16 %v392, %v391
      %v401 = vunpack.c.l.b16 %v368
      %v402 = vunpack.c.l.b16 %v369
      %v403 = vunpack.c.l.b16 %v370
      %v404 = vunpack.c.l.b16 %v371
      %v405 = vunpack.c.l.b16 %v372
      %v406 = vunpack.c.l.b16 %v373
      %v407 = vunpack.c.l.b16 %v374
      %v408 = vpack.c.b16 %v401, %v401
      %v409 = vpack.c.b16 %v402, %v402
      %v410 = vpack.c.b16 %v403, %v403
      %v411 = vpack.c.b16 %v404, %v404
      %v412 = vpack.c.b16 %v405, %v405
      %v413 = vpack.c.b16 %v406, %v406
      %v414 = vpack.c.b16 %v407, %v407
      %v415 = vunpack.c.l.b16 %v408
      %v416 = vunpack.c.l.b16 %v409
      %v417 = vunpack.c.l.b16 %v410
      %v418 = vunpack.c.l.b16 %v411
      %v419 = vunpack.c.l.b16 %v412
      %v420 = vunpack.c.l.b16 %v413
      %v421 = vunpack.c.l.b16 %v414
      %v422 = vrot.slane %v416, 7
      %vm423 = vcmask 1041409
      %v424 = vsel %vm423, %v422, %v415
      %v425 = vrot.slane %v417, 6
      %vm426 = vcmask 1042434
      %v427 = vsel %vm426, %v425, %v424
      %v428 = vrot.slane %v418, 5
      %vm429 = vcmask 1043459
      %v430 = vsel %vm429, %v428, %v427
      %v431 = vrot.slane %v419, 4
      %vm432 = vcmask 1044484
      %v433 = vsel %vm432, %v431, %v430
      %v434 = vrot.slane %v420, 3
      %vm435 = vcmask 1045509
      %v436 = vsel %vm435, %v434, %v433
      %v437 = vrot.slane %v421, 2
      %vm438 = vcmask 1046534
      %v439 = vsel %vm438, %v437, %v436
      %v440 = vpack.c.b16 %v439, %v439
      %vm441 = vcmask 56320
      %v443 = vsel %vm441, %v393, 0
      %vm445 = vcmask 1042432
      %vm446 = vcmask 1043456
      %v447 = vsel %vm445, 4294967295, 65535
      %v448 = vsel %vm446, %v447, 0
      %v450 = vand.u32 %v440, %v448
      %452 = vmatprep.subr.bf16.mxu0 0
      %453 = vmatpush1.bf16.msra.mxu0 0
      %454 = vmatprep.subr.bf16.mxu0 0
      %455 = vmatpush1.bf16.msra.mxu0 0
      %456 = vmatprep.subr.bf16.mxu0 0
      %457 = vmatpush1.bf16.msra.mxu0 0
      %458 = vmatprep.subr.bf16.mxu0 0
      %459 = vmatpush1.bf16.msra.mxu0 0
      %460 = vmatprep.subr.bf16.mxu0 0
      %461 = vmatpush1.bf16.msra.mxu0 0
      %462 = vmatprep.subr.bf16.mxu0 0
      %463 = vmatpush1.bf16.msra.mxu0 0
      %464 = vmatprep.subr.bf16.mxu0 0
      %465 = vmatpush1.bf16.msra.mxu0 0
      %466 = vmatprep.subr.bf16.mxu0 0
      %467 = vmatpush1.bf16.msra.mxu0 %v450
      %468 = vmatprep.subr.bf16.mxu0 0
      %469 = vmatpush2.bf16.msra.mxu0 0
      %470 = vmatprep.subr.bf16.mxu0 0
      %471 = vmatpush2.bf16.msra.mxu0 0
      %472 = vmatprep.subr.bf16.mxu0 0
      %473 = vmatpush2.bf16.msra.mxu0 0
      %474 = vmatprep.subr.bf16.mxu0 0
      %475 = vmatpush2.bf16.msra.mxu0 0
      %476 = vmatprep.subr.bf16.mxu0 0
      %477 = vmatpush2.bf16.msra.mxu0 0
      %478 = vmatprep.subr.bf16.mxu0 0
      %479 = vmatpush2.bf16.msra.mxu0 0
      %480 = vmatprep.subr.bf16.mxu0 0
      %481 = vmatpush2.bf16.msra.mxu0 0
      %482 = vmatprep.subr.bf16.mxu0 0
      %483 = vmatpush2.bf16.msra.mxu0 0
      %484 = vmatprep.mubr.bf16.mxu0 0
      %485 = vmatmul.mubr.bf16.gmra.mxu0 %v443
      %v486 = vpop.f32.mrf.mxu0
      %v487 = vadd.f32 %v382, %v486
      %v488 = vpop.f32.mrf.mxu0
      %v489 = vpop.f32.mrf.mxu0
      %v490 = vadd.f32 %v387, %v489
      %v491 = vpop.f32.mrf.mxu0
      %492 = vdwg.mxu0
      %v493 = vmax.f32 %v487, 0.0
      %v494 = vmax.f32 %v490, 0.0
      %v495 = vpack.c.bf16 %v494, %v493
      %v496 = vld [vmem:[%s349] sm:$0xf]
      %v497 = vld [vmem:[%s349 + $0x4] sm:$0xf]
      %v498 = vld [vmem:[%s349 + $0x8] sm:$0xf]
      %v499 = vld [vmem:[%s349 + $0xc] sm:$0xf]
      %v500 = vld [vmem:[%s354] sm:$0xff]
      %v501 = vld [vmem:[%s354 + $0x8] sm:$0xff]
      %v502 = vld [vmem:[%s354 + $0x10] sm:$0xff]
      %v503 = vld [vmem:[%s354 + $0x18] sm:$0xff]
      %505 = vset.pattern.permute.xlu0 0
      %506 = vperm.xlu0 %505, %v500
      %v507 = vpop.permute.xlu0 %506
      %510 = vset.pattern.permute.xlu0 0
      %511 = vperm.xlu0 %510, %v501
      %v512 = vpop.permute.xlu0 %511
      %515 = vset.pattern.permute.xlu0 0
      %516 = vperm.xlu0 %515, %v502
      %v517 = vpop.permute.xlu0 %516
      %520 = vset.pattern.permute.xlu0 0
      %521 = vperm.xlu0 %520, %v503
      %v522 = vpop.permute.xlu0 %521
      %v528 = vunpack.c.l.b16 %v496
      %v529 = vunpack.c.l.b16 %v497
      %v530 = vunpack.c.l.b16 %v498
      %v531 = vunpack.c.l.b16 %v499
      %v532 = vpack.c.b16 %v529, %v528
      %v533 = vpack.c.b16 %v531, %v530
      %vm534 = vcmask 130048
      %v536 = vsel %vm534, %v532, 0
      %v539 = vsel %vm534, %v533, 0
      %541 = vmatprep.subr.bf16.mxu0 0
      %542 = vmatpush1.bf16.msra.mxu0 0
      %543 = vmatprep.subr.bf16.mxu0 0
      %544 = vmatpush1.bf16.msra.mxu0 0
      %545 = vmatprep.subr.bf16.mxu0 0
      %546 = vmatpush1.bf16.msra.mxu0 0
      %547 = vmatprep.subr.bf16.mxu0 0
      %548 = vmatpush1.bf16.msra.mxu0 0
      %549 = vmatprep.subr.bf16.mxu0 0
      %550 = vmatpush1.bf16.msra.mxu0 0
      %551 = vmatprep.subr.bf16.mxu0 0
      %552 = vmatpush1.bf16.msra.mxu0 0
      %553 = vmatprep.subr.bf16.mxu0 0
      %554 = vmatpush1.bf16.msra.mxu0 0
      %555 = vmatprep.subr.bf16.mxu0 0
      %556 = vmatpush1.bf16.msra.mxu0 %v495
      %557 = vmatprep.subr.bf16.mxu0 0
      %558 = vmatpush2.bf16.msra.mxu0 0
      %559 = vmatprep.subr.bf16.mxu0 0
      %560 = vmatpush2.bf16.msra.mxu0 0
      %561 = vmatprep.subr.bf16.mxu0 0
      %562 = vmatpush2.bf16.msra.mxu0 0
      %563 = vmatprep.subr.bf16.mxu0 0
      %564 = vmatpush2.bf16.msra.mxu0 0
      %565 = vmatprep.subr.bf16.mxu0 0
      %566 = vmatpush2.bf16.msra.mxu0 0
      %567 = vmatprep.subr.bf16.mxu0 0
      %568 = vmatpush2.bf16.msra.mxu0 0
      %569 = vmatprep.subr.bf16.mxu0 0
      %570 = vmatpush2.bf16.msra.mxu0 0
      %571 = vmatprep.subr.bf16.mxu0 0
      %572 = vmatpush2.bf16.msra.mxu0 0
      %573 = vmatprep.mubr.bf16.mxu0 0
      %574 = vmatmul.mubr.bf16.gmra.mxu0 %v536
      %v575 = vpop.f32.mrf.mxu0
      %v576 = vadd.f32 %v507, %v575
      %v577 = vpop.f32.mrf.mxu0
      %v578 = vpop.f32.mrf.mxu0
      %v579 = vadd.f32 %v512, %v578
      %v580 = vpop.f32.mrf.mxu0
      %581 = vmatprep.mubr.bf16.mxu0 0
      %582 = vmatmul.mubr.bf16.gmra.mxu0 %v539
      %v583 = vpop.f32.mrf.mxu0
      %v584 = vadd.f32 %v517, %v583
      %v585 = vpop.f32.mrf.mxu0
      %v586 = vpop.f32.mrf.mxu0
      %v587 = vadd.f32 %v522, %v586
      %v588 = vpop.f32.mrf.mxu0
      %589 = vdwg.mxu0
      %v590 = vmax.f32 %v576, 0.0
      %v591 = vmax.f32 %v579, 0.0
      %v592 = vmax.f32 %v584, 0.0
      %v593 = vmax.f32 %v587, 0.0
      %v594 = vrot.slane %v415, 1
      %v595 = vsel %vm423, %v416, %v594
      %v596 = vrot.slane %v417, 7
      %v597 = vsel %vm426, %v596, %v595
      %v598 = vrot.slane %v418, 6
      %v599 = vsel %vm429, %v598, %v597
      %v600 = vrot.slane %v419, 5
      %v601 = vsel %vm432, %v600, %v599
      %v602 = vrot.slane %v420, 4
      %v603 = vsel %vm435, %v602, %v601
      %v604 = vrot.slane %v421, 3
      %v605 = vsel %vm438, %v604, %v603
      %v606 = vpack.c.b16 %v605, %v605
      %v608 = vand.u32 %v606, %v448
      %610 = vmatprep.subr.bf16.mxu0 0
      %611 = vmatpush1.bf16.msra.mxu0 0
      %612 = vmatprep.subr.bf16.mxu0 0
      %613 = vmatpush1.bf16.msra.mxu0 0
      %614 = vmatprep.subr.bf16.mxu0 0
      %615 = vmatpush1.bf16.msra.mxu0 0
      %616 = vmatprep.subr.bf16.mxu0 0
      %617 = vmatpush1.bf16.msra.mxu0 0
      %618 = vmatprep.subr.bf16.mxu0 0
      %619 = vmatpush1.bf16.msra.mxu0 0
      %620 = vmatprep.subr.bf16.mxu0 0
      %621 = vmatpush1.bf16.msra.mxu0 0
      %622 = vmatprep.subr.bf16.mxu0 0
      %623 = vmatpush1.bf16.msra.mxu0 0
      %624 = vmatprep.subr.bf16.mxu0 0
      %625 = vmatpush1.bf16.msra.mxu0 %v608
      %626 = vmatprep.subr.bf16.mxu0 0
      %627 = vmatpush2.bf16.msra.mxu0 0
      %628 = vmatprep.subr.bf16.mxu0 0
      %629 = vmatpush2.bf16.msra.mxu0 0
      %630 = vmatprep.subr.bf16.mxu0 0
      %631 = vmatpush2.bf16.msra.mxu0 0
      %632 = vmatprep.subr.bf16.mxu0 0
      %633 = vmatpush2.bf16.msra.mxu0 0
      %634 = vmatprep.subr.bf16.mxu0 0
      %635 = vmatpush2.bf16.msra.mxu0 0
      %636 = vmatprep.subr.bf16.mxu0 0
      %637 = vmatpush2.bf16.msra.mxu0 0
      %638 = vmatprep.subr.bf16.mxu0 0
      %639 = vmatpush2.bf16.msra.mxu0 0
      %640 = vmatprep.subr.bf16.mxu0 0
      %641 = vmatpush2.bf16.msra.mxu0 0
      %642 = vmatprep.mubr.bf16.mxu0 0
      %643 = vmatmul.mubr.bf16.gmra.mxu0 %v443
      %v644 = vpop.f32.mrf.mxu0
      %v645 = vadd.f32 %v382, %v644
      %v646 = vpop.f32.mrf.mxu0
      %v647 = vpop.f32.mrf.mxu0
      %v648 = vadd.f32 %v387, %v647
      %v649 = vpop.f32.mrf.mxu0
      %650 = vdwg.mxu0
      %v651 = vmax.f32 %v645, 0.0
      %v652 = vmax.f32 %v648, 0.0
      %v653 = vpack.c.bf16 %v652, %v651
      %654 = vmatprep.subr.bf16.mxu0 0
      %655 = vmatpush1.bf16.msra.mxu0 0
      %656 = vmatprep.subr.bf16.mxu0 0
      %657 = vmatpush1.bf16.msra.mxu0 0
      %658 = vmatprep.subr.bf16.mxu0 0
      %659 = vmatpush1.bf16.msra.mxu0 0
      %660 = vmatprep.subr.bf16.mxu0 0
      %661 = vmatpush1.bf16.msra.mxu0 0
      %662 = vmatprep.subr.bf16.mxu0 0
      %663 = vmatpush1.bf16.msra.mxu0 0
      %664 = vmatprep.subr.bf16.mxu0 0
      %665 = vmatpush1.bf16.msra.mxu0 0
      %666 = vmatprep.subr.bf16.mxu0 0
      %667 = vmatpush1.bf16.msra.mxu0 0
      %668 = vmatprep.subr.bf16.mxu0 0
      %669 = vmatpush1.bf16.msra.mxu0 %v653
      %670 = vmatprep.subr.bf16.mxu0 0
      %671 = vmatpush2.bf16.msra.mxu0 0
      %672 = vmatprep.subr.bf16.mxu0 0
      %673 = vmatpush2.bf16.msra.mxu0 0
      %674 = vmatprep.subr.bf16.mxu0 0
      %675 = vmatpush2.bf16.msra.mxu0 0
      %676 = vmatprep.subr.bf16.mxu0 0
      %677 = vmatpush2.bf16.msra.mxu0 0
      %678 = vmatprep.subr.bf16.mxu0 0
      %679 = vmatpush2.bf16.msra.mxu0 0
      %680 = vmatprep.subr.bf16.mxu0 0
      %681 = vmatpush2.bf16.msra.mxu0 0
      %682 = vmatprep.subr.bf16.mxu0 0
      %683 = vmatpush2.bf16.msra.mxu0 0
      %684 = vmatprep.subr.bf16.mxu0 0
      %685 = vmatpush2.bf16.msra.mxu0 0
      %686 = vmatprep.mubr.bf16.mxu0 0
      %687 = vmatmul.mubr.bf16.gmra.mxu0 %v536
      %v688 = vpop.f32.mrf.mxu0
      %v689 = vadd.f32 %v507, %v688
      %v690 = vpop.f32.mrf.mxu0
      %v691 = vpop.f32.mrf.mxu0
      %v692 = vadd.f32 %v512, %v691
      %v693 = vpop.f32.mrf.mxu0
      %694 = vmatprep.mubr.bf16.mxu0 0
      %695 = vmatmul.mubr.bf16.gmra.mxu0 %v539
      %v696 = vpop.f32.mrf.mxu0
      %v697 = vadd.f32 %v517, %v696
      %v698 = vpop.f32.mrf.mxu0
      %v699 = vpop.f32.mrf.mxu0
      %v700 = vadd.f32 %v522, %v699
      %v701 = vpop.f32.mrf.mxu0
      %702 = vdwg.mxu0
      %v703 = vmax.f32 %v689, 0.0
      %v704 = vmax.f32 %v692, 0.0
      %v705 = vmax.f32 %v697, 0.0
      %v706 = vmax.f32 %v700, 0.0
      %v707 = vmax.f32 %v590, %v703
      %v708 = vmax.f32 %v591, %v704
      %v709 = vmax.f32 %v592, %v705
      %v710 = vmax.f32 %v593, %v706
      %v711 = vld [vmem:[%s334] sm:$0x2]
      %v712 = vld [vmem:[%s334 + $0x4] sm:$0x2]
      %v713 = vld [vmem:[%s334 + $0x8] sm:$0x2]
      %v714 = vld [vmem:[%s334 + $0xc] sm:$0x2]
      %v715 = vld [vmem:[%s334 + $0x10] sm:$0x2]
      %v716 = vld [vmem:[%s334 + $0x14] sm:$0x2]
      %v717 = vld [vmem:[%s334 + $0x18] sm:$0x2]
      %v725 = vunpack.c.l.b16 %v711
      %v726 = vunpack.c.l.b16 %v712
      %v727 = vunpack.c.l.b16 %v713
      %v728 = vunpack.c.l.b16 %v714
      %v729 = vunpack.c.l.b16 %v715
      %v730 = vunpack.c.l.b16 %v716
      %v731 = vunpack.c.l.b16 %v717
      %v732 = vpack.c.b16 %v725, %v725
      %v733 = vpack.c.b16 %v726, %v726
      %v734 = vpack.c.b16 %v727, %v727
      %v735 = vpack.c.b16 %v728, %v728
      %v736 = vpack.c.b16 %v729, %v729
      %v737 = vpack.c.b16 %v730, %v730
      %v738 = vpack.c.b16 %v731, %v731
      %v739 = vunpack.c.l.b16 %v732
      %v740 = vunpack.c.l.b16 %v733
      %v741 = vunpack.c.l.b16 %v734
      %v742 = vunpack.c.l.b16 %v735
      %v743 = vunpack.c.l.b16 %v736
      %v744 = vunpack.c.l.b16 %v737
      %v745 = vunpack.c.l.b16 %v738
      %v746 = vrot.slane %v739, 2
      %v747 = vrot.slane %v740, 1
      %v748 = vsel %vm423, %v747, %v746
      %v749 = vsel %vm426, %v741, %v748
      %v750 = vrot.slane %v742, 7
      %v751 = vsel %vm429, %v750, %v749
      %v752 = vrot.slane %v743, 6
      %v753 = vsel %vm432, %v752, %v751
      %v754 = vrot.slane %v744, 5
      %v755 = vsel %vm435, %v754, %v753
      %v756 = vrot.slane %v745, 4
      %v757 = vsel %vm438, %v756, %v755
      %v758 = vpack.c.b16 %v757, %v757
      %v760 = vand.u32 %v758, %v448
      %762 = vmatprep.subr.bf16.mxu0 0
      %763 = vmatpush1.bf16.msra.mxu0 0
      %764 = vmatprep.subr.bf16.mxu0 0
      %765 = vmatpush1.bf16.msra.mxu0 0
      %766 = vmatprep.subr.bf16.mxu0 0
      %767 = vmatpush1.bf16.msra.mxu0 0
      %768 = vmatprep.subr.bf16.mxu0 0
      %769 = vmatpush1.bf16.msra.mxu0 0
      %770 = vmatprep.subr.bf16.mxu0 0
      %771 = vmatpush1.bf16.msra.mxu0 0
      %772 = vmatprep.subr.bf16.mxu0 0
      %773 = vmatpush1.bf16.msra.mxu0 0
      %774 = vmatprep.subr.bf16.mxu0 0
      %775 = vmatpush1.bf16.msra.mxu0 0
      %776 = vmatprep.subr.bf16.mxu0 0
      %777 = vmatpush1.bf16.msra.mxu0 %v760
      %778 = vmatprep.subr.bf16.mxu0 0
      %779 = vmatpush2.bf16.msra.mxu0 0
      %780 = vmatprep.subr.bf16.mxu0 0
      %781 = vmatpush2.bf16.msra.mxu0 0
      %782 = vmatprep.subr.bf16.mxu0 0
      %783 = vmatpush2.bf16.msra.mxu0 0
      %784 = vmatprep.subr.bf16.mxu0 0
      %785 = vmatpush2.bf16.msra.mxu0 0
      %786 = vmatprep.subr.bf16.mxu0 0
      %787 = vmatpush2.bf16.msra.mxu0 0
      %788 = vmatprep.subr.bf16.mxu0 0
      %789 = vmatpush2.bf16.msra.mxu0 0
      %790 = vmatprep.subr.bf16.mxu0 0
      %791 = vmatpush2.bf16.msra.mxu0 0
      %792 = vmatprep.subr.bf16.mxu0 0
      %793 = vmatpush2.bf16.msra.mxu0 0
      %794 = vmatprep.mubr.bf16.mxu0 0
      %795 = vmatmul.mubr.bf16.gmra.mxu0 %v443
      %v796 = vpop.f32.mrf.mxu0
      %v797 = vadd.f32 %v382, %v796
      %v798 = vpop.f32.mrf.mxu0
      %v799 = vpop.f32.mrf.mxu0
      %v800 = vadd.f32 %v387, %v799
      %v801 = vpop.f32.mrf.mxu0
      %802 = vdwg.mxu0
      %v803 = vmax.f32 %v797, 0.0
      %v804 = vmax.f32 %v800, 0.0
      %v805 = vpack.c.bf16 %v804, %v803
      %806 = vmatprep.subr.bf16.mxu0 0
      %807 = vmatpush1.bf16.msra.mxu0 0
      %808 = vmatprep.subr.bf16.mxu0 0
      %809 = vmatpush1.bf16.msra.mxu0 0
      %810 = vmatprep.subr.bf16.mxu0 0
      %811 = vmatpush1.bf16.msra.mxu0 0
      %812 = vmatprep.subr.bf16.mxu0 0
      %813 = vmatpush1.bf16.msra.mxu0 0
      %814 = vmatprep.subr.bf16.mxu0 0
      %815 = vmatpush1.bf16.msra.mxu0 0
      %816 = vmatprep.subr.bf16.mxu0 0
      %817 = vmatpush1.bf16.msra.mxu0 0
      %818 = vmatprep.subr.bf16.mxu0 0
      %819 = vmatpush1.bf16.msra.mxu0 0
      %820 = vmatprep.subr.bf16.mxu0 0
      %821 = vmatpush1.bf16.msra.mxu0 %v805
      %822 = vmatprep.subr.bf16.mxu0 0
      %823 = vmatpush2.bf16.msra.mxu0 0
      %824 = vmatprep.subr.bf16.mxu0 0
      %825 = vmatpush2.bf16.msra.mxu0 0
      %826 = vmatprep.subr.bf16.mxu0 0
      %827 = vmatpush2.bf16.msra.mxu0 0
      %828 = vmatprep.subr.bf16.mxu0 0
      %829 = vmatpush2.bf16.msra.mxu0 0
      %830 = vmatprep.subr.bf16.mxu0 0
      %831 = vmatpush2.bf16.msra.mxu0 0
      %832 = vmatprep.subr.bf16.mxu0 0
      %833 = vmatpush2.bf16.msra.mxu0 0
      %834 = vmatprep.subr.bf16.mxu0 0
      %835 = vmatpush2.bf16.msra.mxu0 0
      %836 = vmatprep.subr.bf16.mxu0 0
      %837 = vmatpush2.bf16.msra.mxu0 0
      %838 = vmatprep.mubr.bf16.mxu0 0
      %839 = vmatmul.mubr.bf16.gmra.mxu0 %v536
      %v840 = vpop.f32.mrf.mxu0
      %v841 = vadd.f32 %v507, %v840
      %v842 = vpop.f32.mrf.mxu0
      %v843 = vpop.f32.mrf.mxu0
      %v844 = vadd.f32 %v512, %v843
      %v845 = vpop.f32.mrf.mxu0
      %846 = vmatprep.mubr.bf16.mxu0 0
      %847 = vmatmul.mubr.bf16.gmra.mxu0 %v539
      %v848 = vpop.f32.mrf.mxu0
      %v849 = vadd.f32 %v517, %v848
      %v850 = vpop.f32.mrf.mxu0
      %v851 = vpop.f32.mrf.mxu0
      %v852 = vadd.f32 %v522, %v851
      %v853 = vpop.f32.mrf.mxu0
      %854 = vdwg.mxu0
      %v855 = vmax.f32 %v841, 0.0
      %v856 = vmax.f32 %v844, 0.0
      %v857 = vmax.f32 %v849, 0.0
      %v858 = vmax.f32 %v852, 0.0
      %v859 = vmax.f32 %v707, %v855
      %v860 = vmax.f32 %v708, %v856
      %v861 = vmax.f32 %v709, %v857
      %v862 = vmax.f32 %v710, %v858
      %v863 = vrot.slane %v739, 3
      %v864 = vrot.slane %v740, 2
      %v865 = vsel %vm423, %v864, %v863
      %v866 = vrot.slane %v741, 1
      %v867 = vsel %vm426, %v866, %v865
      %v868 = vsel %vm429, %v742, %v867
      %v869 = vrot.slane %v743, 7
      %v870 = vsel %vm432, %v869, %v868
      %v871 = vrot.slane %v744, 6
      %v872 = vsel %vm435, %v871, %v870
      %v873 = vrot.slane %v745, 5
      %v874 = vsel %vm438, %v873, %v872
      %v875 = vpack.c.b16 %v874, %v874
      %v877 = vand.u32 %v875, %v448
      %879 = vmatprep.subr.bf16.mxu0 0
      %880 = vmatpush1.bf16.msra.mxu0 0
      %881 = vmatprep.subr.bf16.mxu0 0
      %882 = vmatpush1.bf16.msra.mxu0 0
      %883 = vmatprep.subr.bf16.mxu0 0
      %884 = vmatpush1.bf16.msra.mxu0 0
      %885 = vmatprep.subr.bf16.mxu0 0
      %886 = vmatpush1.bf16.msra.mxu0 0
      %887 = vmatprep.subr.bf16.mxu0 0
      %888 = vmatpush1.bf16.msra.mxu0 0
      %889 = vmatprep.subr.bf16.mxu0 0
      %890 = vmatpush1.bf16.msra.mxu0 0
      %891 = vmatprep.subr.bf16.mxu0 0
      %892 = vmatpush1.bf16.msra.mxu0 0
      %893 = vmatprep.subr.bf16.mxu0 0
      %894 = vmatpush1.bf16.msra.mxu0 %v877
      %895 = vmatprep.subr.bf16.mxu0 0
      %896 = vmatpush2.bf16.msra.mxu0 0
      %897 = vmatprep.subr.bf16.mxu0 0
      %898 = vmatpush2.bf16.msra.mxu0 0
      %899 = vmatprep.subr.bf16.mxu0 0
      %900 = vmatpush2.bf16.msra.mxu0 0
      %901 = vmatprep.subr.bf16.mxu0 0
      %902 = vmatpush2.bf16.msra.mxu0 0
      %903 = vmatprep.subr.bf16.mxu0 0
      %904 = vmatpush2.bf16.msra.mxu0 0
      %905 = vmatprep.subr.bf16.mxu0 0
      %906 = vmatpush2.bf16.msra.mxu0 0
      %907 = vmatprep.subr.bf16.mxu0 0
      %908 = vmatpush2.bf16.msra.mxu0 0
      %909 = vmatprep.subr.bf16.mxu0 0
      %910 = vmatpush2.bf16.msra.mxu0 0
      %911 = vmatprep.mubr.bf16.mxu0 0
      %912 = vmatmul.mubr.bf16.gmra.mxu0 %v443
      %v913 = vpop.f32.mrf.mxu0
      %v914 = vadd.f32 %v382, %v913
      %v915 = vpop.f32.mrf.mxu0
      %v916 = vpop.f32.mrf.mxu0
      %v917 = vadd.f32 %v387, %v916
      %v918 = vpop.f32.mrf.mxu0
      %919 = vdwg.mxu0
      %v920 = vmax.f32 %v914, 0.0
      %v921 = vmax.f32 %v917, 0.0
      %v922 = vpack.c.bf16 %v921, %v920
      %923 = vmatprep.subr.bf16.mxu0 0
      %924 = vmatpush1.bf16.msra.mxu0 0
      %925 = vmatprep.subr.bf16.mxu0 0
      %926 = vmatpush1.bf16.msra.mxu0 0
      %927 = vmatprep.subr.bf16.mxu0 0
      %928 = vmatpush1.bf16.msra.mxu0 0
      %929 = vmatprep.subr.bf16.mxu0 0
      %930 = vmatpush1.bf16.msra.mxu0 0
      %931 = vmatprep.subr.bf16.mxu0 0
      %932 = vmatpush1.bf16.msra.mxu0 0
      %933 = vmatprep.subr.bf16.mxu0 0
      %934 = vmatpush1.bf16.msra.mxu0 0
      %935 = vmatprep.subr.bf16.mxu0 0
      %936 = vmatpush1.bf16.msra.mxu0 0
      %937 = vmatprep.subr.bf16.mxu0 0
      %938 = vmatpush1.bf16.msra.mxu0 %v922
      %939 = vmatprep.subr.bf16.mxu0 0
      %940 = vmatpush2.bf16.msra.mxu0 0
      %941 = vmatprep.subr.bf16.mxu0 0
      %942 = vmatpush2.bf16.msra.mxu0 0
      %943 = vmatprep.subr.bf16.mxu0 0
      %944 = vmatpush2.bf16.msra.mxu0 0
      %945 = vmatprep.subr.bf16.mxu0 0
      %946 = vmatpush2.bf16.msra.mxu0 0
      %947 = vmatprep.subr.bf16.mxu0 0
      %948 = vmatpush2.bf16.msra.mxu0 0
      %949 = vmatprep.subr.bf16.mxu0 0
      %950 = vmatpush2.bf16.msra.mxu0 0
      %951 = vmatprep.subr.bf16.mxu0 0
      %952 = vmatpush2.bf16.msra.mxu0 0
      %953 = vmatprep.subr.bf16.mxu0 0
      %954 = vmatpush2.bf16.msra.mxu0 0
      %955 = vmatprep.mubr.bf16.mxu0 0
      %956 = vmatmul.mubr.bf16.gmra.mxu0 %v536
      %v957 = vpop.f32.mrf.mxu0
      %v958 = vadd.f32 %v507, %v957
      %v959 = vpop.f32.mrf.mxu0
      %v960 = vpop.f32.mrf.mxu0
      %v961 = vadd.f32 %v512, %v960
      %v962 = vpop.f32.mrf.mxu0
      %963 = vmatprep.mubr.bf16.mxu0 0
      %964 = vmatmul.mubr.bf16.gmra.mxu0 %v539
      %v965 = vpop.f32.mrf.mxu0
      %v966 = vadd.f32 %v517, %v965
      %v967 = vpop.f32.mrf.mxu0
      %v968 = vpop.f32.mrf.mxu0
      %v969 = vadd.f32 %v522, %v968
      %v970 = vpop.f32.mrf.mxu0
      %971 = vdwg.mxu0
      %v972 = vmax.f32 %v958, 0.0
      %v973 = vmax.f32 %v961, 0.0
      %v974 = vmax.f32 %v966, 0.0
      %v975 = vmax.f32 %v969, 0.0
      %v976 = vmax.f32 %v859, %v972
      %v977 = vmax.f32 %v860, %v973
      %v978 = vmax.f32 %v861, %v974
      %v979 = vmax.f32 %v862, %v975
      %v980 = vld [vmem:[%s334] sm:$0x4]
      %v981 = vld [vmem:[%s334 + $0x4] sm:$0x4]
      %v982 = vld [vmem:[%s334 + $0x8] sm:$0x4]
      %v983 = vld [vmem:[%s334 + $0xc] sm:$0x4]
      %v984 = vld [vmem:[%s334 + $0x10] sm:$0x4]
      %v985 = vld [vmem:[%s334 + $0x14] sm:$0x4]
      %v986 = vld [vmem:[%s334 + $0x18] sm:$0x4]
      %v994 = vunpack.c.l.b16 %v980
      %v995 = vunpack.c.l.b16 %v981
      %v996 = vunpack.c.l.b16 %v982
      %v997 = vunpack.c.l.b16 %v983
      %v998 = vunpack.c.l.b16 %v984
      %v999 = vunpack.c.l.b16 %v985
      %v1000 = vunpack.c.l.b16 %v986
      %v1001 = vpack.c.b16 %v994, %v994
      %v1002 = vpack.c.b16 %v995, %v995
      %v1003 = vpack.c.b16 %v996, %v996
      %v1004 = vpack.c.b16 %v997, %v997
      %v1005 = vpack.c.b16 %v998, %v998
      %v1006 = vpack.c.b16 %v999, %v999
      %v1007 = vpack.c.b16 %v1000, %v1000
      %v1008 = vunpack.c.l.b16 %v1001
      %v1009 = vunpack.c.l.b16 %v1002
      %v1010 = vunpack.c.l.b16 %v1003
      %v1011 = vunpack.c.l.b16 %v1004
      %v1012 = vunpack.c.l.b16 %v1005
      %v1013 = vunpack.c.l.b16 %v1006
      %v1014 = vunpack.c.l.b16 %v1007
      %v1015 = vrot.slane %v1008, 4
      %v1016 = vrot.slane %v1009, 3
      %v1017 = vsel %vm423, %v1016, %v1015
      %v1018 = vrot.slane %v1010, 2
      %v1019 = vsel %vm426, %v1018, %v1017
      %v1020 = vrot.slane %v1011, 1
      %v1021 = vsel %vm429, %v1020, %v1019
      %v1022 = vsel %vm432, %v1012, %v1021
      %v1023 = vrot.slane %v1013, 7
      %v1024 = vsel %vm435, %v1023, %v1022
      %v1025 = vrot.slane %v1014, 6
      %v1026 = vsel %vm438, %v1025, %v1024
      %v1027 = vpack.c.b16 %v1026, %v1026
      %v1029 = vand.u32 %v1027, %v448
      %1031 = vmatprep.subr.bf16.mxu0 0
      %1032 = vmatpush1.bf16.msra.mxu0 0
      %1033 = vmatprep.subr.bf16.mxu0 0
      %1034 = vmatpush1.bf16.msra.mxu0 0
      %1035 = vmatprep.subr.bf16.mxu0 0
      %1036 = vmatpush1.bf16.msra.mxu0 0
      %1037 = vmatprep.subr.bf16.mxu0 0
      %1038 = vmatpush1.bf16.msra.mxu0 0
      %1039 = vmatprep.subr.bf16.mxu0 0
      %1040 = vmatpush1.bf16.msra.mxu0 0
      %1041 = vmatprep.subr.bf16.mxu0 0
      %1042 = vmatpush1.bf16.msra.mxu0 0
      %1043 = vmatprep.subr.bf16.mxu0 0
      %1044 = vmatpush1.bf16.msra.mxu0 0
      %1045 = vmatprep.subr.bf16.mxu0 0
      %1046 = vmatpush1.bf16.msra.mxu0 %v1029
      %1047 = vmatprep.subr.bf16.mxu0 0
      %1048 = vmatpush2.bf16.msra.mxu0 0
      %1049 = vmatprep.subr.bf16.mxu0 0
      %1050 = vmatpush2.bf16.msra.mxu0 0
      %1051 = vmatprep.subr.bf16.mxu0 0
      %1052 = vmatpush2.bf16.msra.mxu0 0
      %1053 = vmatprep.subr.bf16.mxu0 0
      %1054 = vmatpush2.bf16.msra.mxu0 0
      %1055 = vmatprep.subr.bf16.mxu0 0
      %1056 = vmatpush2.bf16.msra.mxu0 0
      %1057 = vmatprep.subr.bf16.mxu0 0
      %1058 = vmatpush2.bf16.msra.mxu0 0
      %1059 = vmatprep.subr.bf16.mxu0 0
      %1060 = vmatpush2.bf16.msra.mxu0 0
      %1061 = vmatprep.subr.bf16.mxu0 0
      %1062 = vmatpush2.bf16.msra.mxu0 0
      %1063 = vmatprep.mubr.bf16.mxu0 0
      %1064 = vmatmul.mubr.bf16.gmra.mxu0 %v443
      %v1065 = vpop.f32.mrf.mxu0
      %v1066 = vadd.f32 %v382, %v1065
      %v1067 = vpop.f32.mrf.mxu0
      %v1068 = vpop.f32.mrf.mxu0
      %v1069 = vadd.f32 %v387, %v1068
      %v1070 = vpop.f32.mrf.mxu0
      %1071 = vdwg.mxu0
      %v1072 = vmax.f32 %v1066, 0.0
      %v1073 = vmax.f32 %v1069, 0.0
      %v1074 = vpack.c.bf16 %v1073, %v1072
      %1075 = vmatprep.subr.bf16.mxu0 0
      %1076 = vmatpush1.bf16.msra.mxu0 0
      %1077 = vmatprep.subr.bf16.mxu0 0
      %1078 = vmatpush1.bf16.msra.mxu0 0
      %1079 = vmatprep.subr.bf16.mxu0 0
      %1080 = vmatpush1.bf16.msra.mxu0 0
      %1081 = vmatprep.subr.bf16.mxu0 0
      %1082 = vmatpush1.bf16.msra.mxu0 0
      %1083 = vmatprep.subr.bf16.mxu0 0
      %1084 = vmatpush1.bf16.msra.mxu0 0
      %1085 = vmatprep.subr.bf16.mxu0 0
      %1086 = vmatpush1.bf16.msra.mxu0 0
      %1087 = vmatprep.subr.bf16.mxu0 0
      %1088 = vmatpush1.bf16.msra.mxu0 0
      %1089 = vmatprep.subr.bf16.mxu0 0
      %1090 = vmatpush1.bf16.msra.mxu0 %v1074
      %1091 = vmatprep.subr.bf16.mxu0 0
      %1092 = vmatpush2.bf16.msra.mxu0 0
      %1093 = vmatprep.subr.bf16.mxu0 0
      %1094 = vmatpush2.bf16.msra.mxu0 0
      %1095 = vmatprep.subr.bf16.mxu0 0
      %1096 = vmatpush2.bf16.msra.mxu0 0
      %1097 = vmatprep.subr.bf16.mxu0 0
      %1098 = vmatpush2.bf16.msra.mxu0 0
      %1099 = vmatprep.subr.bf16.mxu0 0
      %1100 = vmatpush2.bf16.msra.mxu0 0
      %1101 = vmatprep.subr.bf16.mxu0 0
      %1102 = vmatpush2.bf16.msra.mxu0 0
      %1103 = vmatprep.subr.bf16.mxu0 0
      %1104 = vmatpush2.bf16.msra.mxu0 0
      %1105 = vmatprep.subr.bf16.mxu0 0
      %1106 = vmatpush2.bf16.msra.mxu0 0
      %1107 = vmatprep.mubr.bf16.mxu0 0
      %1108 = vmatmul.mubr.bf16.gmra.mxu0 %v536
      %v1109 = vpop.f32.mrf.mxu0
      %v1110 = vadd.f32 %v507, %v1109
      %v1111 = vpop.f32.mrf.mxu0
      %v1112 = vpop.f32.mrf.mxu0
      %v1113 = vadd.f32 %v512, %v1112
      %v1114 = vpop.f32.mrf.mxu0
      %1115 = vmatprep.mubr.bf16.mxu0 0
      %1116 = vmatmul.mubr.bf16.gmra.mxu0 %v539
      %v1117 = vpop.f32.mrf.mxu0
      %v1118 = vadd.f32 %v517, %v1117
      %v1119 = vpop.f32.mrf.mxu0
      %v1120 = vpop.f32.mrf.mxu0
      %v1121 = vadd.f32 %v522, %v1120
      %v1122 = vpop.f32.mrf.mxu0
      %1123 = vdwg.mxu0
      %v1124 = vmax.f32 %v1110, 0.0
      %v1125 = vmax.f32 %v1113, 0.0
      %v1126 = vmax.f32 %v1118, 0.0
      %v1127 = vmax.f32 %v1121, 0.0
      %v1128 = vmax.f32 %v976, %v1124
      %v1129 = vmax.f32 %v977, %v1125
      %v1130 = vmax.f32 %v978, %v1126
      %v1131 = vmax.f32 %v979, %v1127
      %v1132 = vrot.slane %v1008, 5
      %v1133 = vrot.slane %v1009, 4
      %v1134 = vsel %vm423, %v1133, %v1132
      %v1135 = vrot.slane %v1010, 3
      %v1136 = vsel %vm426, %v1135, %v1134
      %v1137 = vrot.slane %v1011, 2
      %v1138 = vsel %vm429, %v1137, %v1136
      %v1139 = vrot.slane %v1012, 1
      %v1140 = vsel %vm432, %v1139, %v1138
      %v1141 = vsel %vm435, %v1013, %v1140
      %v1142 = vrot.slane %v1014, 7
      %v1143 = vsel %vm438, %v1142, %v1141
      %v1144 = vpack.c.b16 %v1143, %v1143
      %v1146 = vand.u32 %v1144, %v448
      %1148 = vmatprep.subr.bf16.mxu0 0
      %1149 = vmatpush1.bf16.msra.mxu0 0
      %1150 = vmatprep.subr.bf16.mxu0 0
      %1151 = vmatpush1.bf16.msra.mxu0 0
      %1152 = vmatprep.subr.bf16.mxu0 0
      %1153 = vmatpush1.bf16.msra.mxu0 0
      %1154 = vmatprep.subr.bf16.mxu0 0
      %1155 = vmatpush1.bf16.msra.mxu0 0
      %1156 = vmatprep.subr.bf16.mxu0 0
      %1157 = vmatpush1.bf16.msra.mxu0 0
      %1158 = vmatprep.subr.bf16.mxu0 0
      %1159 = vmatpush1.bf16.msra.mxu0 0
      %1160 = vmatprep.subr.bf16.mxu0 0
      %1161 = vmatpush1.bf16.msra.mxu0 0
      %1162 = vmatprep.subr.bf16.mxu0 0
      %1163 = vmatpush1.bf16.msra.mxu0 %v1146
      %1164 = vmatprep.subr.bf16.mxu0 0
      %1165 = vmatpush2.bf16.msra.mxu0 0
      %1166 = vmatprep.subr.bf16.mxu0 0
      %1167 = vmatpush2.bf16.msra.mxu0 0
      %1168 = vmatprep.subr.bf16.mxu0 0
      %1169 = vmatpush2.bf16.msra.mxu0 0
      %1170 = vmatprep.subr.bf16.mxu0 0
      %1171 = vmatpush2.bf16.msra.mxu0 0
      %1172 = vmatprep.subr.bf16.mxu0 0
      %1173 = vmatpush2.bf16.msra.mxu0 0
      %1174 = vmatprep.subr.bf16.mxu0 0
      %1175 = vmatpush2.bf16.msra.mxu0 0
      %1176 = vmatprep.subr.bf16.mxu0 0
      %1177 = vmatpush2.bf16.msra.mxu0 0
      %1178 = vmatprep.subr.bf16.mxu0 0
      %1179 = vmatpush2.bf16.msra.mxu0 0
      %1180 = vmatprep.mubr.bf16.mxu0 0
      %1181 = vmatmul.mubr.bf16.gmra.mxu0 %v443
      %v1182 = vpop.f32.mrf.mxu0
      %v1183 = vadd.f32 %v382, %v1182
      %v1184 = vpop.f32.mrf.mxu0
      %v1185 = vpop.f32.mrf.mxu0
      %v1186 = vadd.f32 %v387, %v1185
      %v1187 = vpop.f32.mrf.mxu0
      %1188 = vdwg.mxu0
      %v1189 = vmax.f32 %v1183, 0.0
      %v1190 = vmax.f32 %v1186, 0.0
      %v1191 = vpack.c.bf16 %v1190, %v1189
      %1192 = vmatprep.subr.bf16.mxu0 0
      %1193 = vmatpush1.bf16.msra.mxu0 0
      %1194 = vmatprep.subr.bf16.mxu0 0
      %1195 = vmatpush1.bf16.msra.mxu0 0
      %1196 = vmatprep.subr.bf16.mxu0 0
      %1197 = vmatpush1.bf16.msra.mxu0 0
      %1198 = vmatprep.subr.bf16.mxu0 0
      %1199 = vmatpush1.bf16.msra.mxu0 0
      %1200 = vmatprep.subr.bf16.mxu0 0
      %1201 = vmatpush1.bf16.msra.mxu0 0
      %1202 = vmatprep.subr.bf16.mxu0 0
      %1203 = vmatpush1.bf16.msra.mxu0 0
      %1204 = vmatprep.subr.bf16.mxu0 0
      %1205 = vmatpush1.bf16.msra.mxu0 0
      %1206 = vmatprep.subr.bf16.mxu0 0
      %1207 = vmatpush1.bf16.msra.mxu0 %v1191
      %1208 = vmatprep.subr.bf16.mxu0 0
      %1209 = vmatpush2.bf16.msra.mxu0 0
      %1210 = vmatprep.subr.bf16.mxu0 0
      %1211 = vmatpush2.bf16.msra.mxu0 0
      %1212 = vmatprep.subr.bf16.mxu0 0
      %1213 = vmatpush2.bf16.msra.mxu0 0
      %1214 = vmatprep.subr.bf16.mxu0 0
      %1215 = vmatpush2.bf16.msra.mxu0 0
      %1216 = vmatprep.subr.bf16.mxu0 0
      %1217 = vmatpush2.bf16.msra.mxu0 0
      %1218 = vmatprep.subr.bf16.mxu0 0
      %1219 = vmatpush2.bf16.msra.mxu0 0
      %1220 = vmatprep.subr.bf16.mxu0 0
      %1221 = vmatpush2.bf16.msra.mxu0 0
      %1222 = vmatprep.subr.bf16.mxu0 0
      %1223 = vmatpush2.bf16.msra.mxu0 0
      %1224 = vmatprep.mubr.bf16.mxu0 0
      %1225 = vmatmul.mubr.bf16.gmra.mxu0 %v536
      %v1226 = vpop.f32.mrf.mxu0
      %v1227 = vadd.f32 %v507, %v1226
      %v1228 = vpop.f32.mrf.mxu0
      %v1229 = vpop.f32.mrf.mxu0
      %v1230 = vadd.f32 %v512, %v1229
      %v1231 = vpop.f32.mrf.mxu0
      %1232 = vmatprep.mubr.bf16.mxu0 0
      %1233 = vmatmul.mubr.bf16.gmra.mxu0 %v539
      %v1234 = vpop.f32.mrf.mxu0
      %v1235 = vadd.f32 %v517, %v1234
      %v1236 = vpop.f32.mrf.mxu0
      %v1237 = vpop.f32.mrf.mxu0
      %v1238 = vadd.f32 %v522, %v1237
      %v1239 = vpop.f32.mrf.mxu0
      %1240 = vdwg.mxu0
      %v1241 = vmax.f32 %v1227, 0.0
      %v1242 = vmax.f32 %v1230, 0.0
      %v1243 = vmax.f32 %v1235, 0.0
      %v1244 = vmax.f32 %v1238, 0.0
      %v1245 = vmax.f32 %v1128, %v1241
      %v1246 = vmax.f32 %v1129, %v1242
      %v1247 = vmax.f32 %v1130, %v1243
      %v1248 = vmax.f32 %v1131, %v1244
      %v1249 = vld [vmem:[%s334] sm:$0x8]
      %v1250 = vld [vmem:[%s334 + $0x4] sm:$0x8]
      %v1251 = vld [vmem:[%s334 + $0x8] sm:$0x8]
      %v1252 = vld [vmem:[%s334 + $0xc] sm:$0x8]
      %v1253 = vld [vmem:[%s334 + $0x10] sm:$0x8]
      %v1254 = vld [vmem:[%s334 + $0x14] sm:$0x8]
      %v1255 = vld [vmem:[%s334 + $0x18] sm:$0x8]
      %v1263 = vunpack.c.l.b16 %v1249
      %v1264 = vunpack.c.l.b16 %v1250
      %v1265 = vunpack.c.l.b16 %v1251
      %v1266 = vunpack.c.l.b16 %v1252
      %v1267 = vunpack.c.l.b16 %v1253
      %v1268 = vunpack.c.l.b16 %v1254
      %v1269 = vunpack.c.l.b16 %v1255
      %v1270 = vpack.c.b16 %v1263, %v1263
      %v1271 = vpack.c.b16 %v1264, %v1264
      %v1272 = vpack.c.b16 %v1265, %v1265
      %v1273 = vpack.c.b16 %v1266, %v1266
      %v1274 = vpack.c.b16 %v1267, %v1267
      %v1275 = vpack.c.b16 %v1268, %v1268
      %v1276 = vpack.c.b16 %v1269, %v1269
      %v1277 = vunpack.c.l.b16 %v1270
      %v1278 = vunpack.c.l.b16 %v1271
      %v1279 = vunpack.c.l.b16 %v1272
      %v1280 = vunpack.c.l.b16 %v1273
      %v1281 = vunpack.c.l.b16 %v1274
      %v1282 = vunpack.c.l.b16 %v1275
      %v1283 = vunpack.c.l.b16 %v1276
      %v1284 = vrot.slane %v1277, 6
      %v1285 = vrot.slane %v1278, 5
      %v1286 = vsel %vm423, %v1285, %v1284
      %v1287 = vrot.slane %v1279, 4
      %v1288 = vsel %vm426, %v1287, %v1286
      %v1289 = vrot.slane %v1280, 3
      %v1290 = vsel %vm429, %v1289, %v1288
      %v1291 = vrot.slane %v1281, 2
      %v1292 = vsel %vm432, %v1291, %v1290
      %v1293 = vrot.slane %v1282, 1
      %v1294 = vsel %vm435, %v1293, %v1292
      %v1295 = vsel %vm438, %v1283, %v1294
      %v1296 = vpack.c.b16 %v1295, %v1295
      %v1298 = vand.u32 %v1296, %v448
      %1300 = vmatprep.subr.bf16.mxu0 0
      %1301 = vmatpush1.bf16.msra.mxu0 0
      %1302 = vmatprep.subr.bf16.mxu0 0
      %1303 = vmatpush1.bf16.msra.mxu0 0
      %1304 = vmatprep.subr.bf16.mxu0 0
      %1305 = vmatpush1.bf16.msra.mxu0 0
      %1306 = vmatprep.subr.bf16.mxu0 0
      %1307 = vmatpush1.bf16.msra.mxu0 0
      %1308 = vmatprep.subr.bf16.mxu0 0
      %1309 = vmatpush1.bf16.msra.mxu0 0
      %1310 = vmatprep.subr.bf16.mxu0 0
      %1311 = vmatpush1.bf16.msra.mxu0 0
      %1312 = vmatprep.subr.bf16.mxu0 0
      %1313 = vmatpush1.bf16.msra.mxu0 0
      %1314 = vmatprep.subr.bf16.mxu0 0
      %1315 = vmatpush1.bf16.msra.mxu0 %v1298
      %1316 = vmatprep.subr.bf16.mxu0 0
      %1317 = vmatpush2.bf16.msra.mxu0 0
      %1318 = vmatprep.subr.bf16.mxu0 0
      %1319 = vmatpush2.bf16.msra.mxu0 0
      %1320 = vmatprep.subr.bf16.mxu0 0
      %1321 = vmatpush2.bf16.msra.mxu0 0
      %1322 = vmatprep.subr.bf16.mxu0 0
      %1323 = vmatpush2.bf16.msra.mxu0 0
      %1324 = vmatprep.subr.bf16.mxu0 0
      %1325 = vmatpush2.bf16.msra.mxu0 0
      %1326 = vmatprep.subr.bf16.mxu0 0
      %1327 = vmatpush2.bf16.msra.mxu0 0
      %1328 = vmatprep.subr.bf16.mxu0 0
      %1329 = vmatpush2.bf16.msra.mxu0 0
      %1330 = vmatprep.subr.bf16.mxu0 0
      %1331 = vmatpush2.bf16.msra.mxu0 0
      %1332 = vmatprep.mubr.bf16.mxu0 0
      %1333 = vmatmul.mubr.bf16.gmra.mxu0 %v443
      %v1334 = vpop.f32.mrf.mxu0
      %v1335 = vadd.f32 %v382, %v1334
      %v1336 = vpop.f32.mrf.mxu0
      %v1337 = vpop.f32.mrf.mxu0
      %v1338 = vadd.f32 %v387, %v1337
      %v1339 = vpop.f32.mrf.mxu0
      %1340 = vdwg.mxu0
      %v1341 = vmax.f32 %v1335, 0.0
      %v1342 = vmax.f32 %v1338, 0.0
      %v1343 = vpack.c.bf16 %v1342, %v1341
      %1344 = vmatprep.subr.bf16.mxu0 0
      %1345 = vmatpush1.bf16.msra.mxu0 0
      %1346 = vmatprep.subr.bf16.mxu0 0
      %1347 = vmatpush1.bf16.msra.mxu0 0
      %1348 = vmatprep.subr.bf16.mxu0 0
      %1349 = vmatpush1.bf16.msra.mxu0 0
      %1350 = vmatprep.subr.bf16.mxu0 0
      %1351 = vmatpush1.bf16.msra.mxu0 0
      %1352 = vmatprep.subr.bf16.mxu0 0
      %1353 = vmatpush1.bf16.msra.mxu0 0
      %1354 = vmatprep.subr.bf16.mxu0 0
      %1355 = vmatpush1.bf16.msra.mxu0 0
      %1356 = vmatprep.subr.bf16.mxu0 0
      %1357 = vmatpush1.bf16.msra.mxu0 0
      %1358 = vmatprep.subr.bf16.mxu0 0
      %1359 = vmatpush1.bf16.msra.mxu0 %v1343
      %1360 = vmatprep.subr.bf16.mxu0 0
      %1361 = vmatpush2.bf16.msra.mxu0 0
      %1362 = vmatprep.subr.bf16.mxu0 0
      %1363 = vmatpush2.bf16.msra.mxu0 0
      %1364 = vmatprep.subr.bf16.mxu0 0
      %1365 = vmatpush2.bf16.msra.mxu0 0
      %1366 = vmatprep.subr.bf16.mxu0 0
      %1367 = vmatpush2.bf16.msra.mxu0 0
      %1368 = vmatprep.subr.bf16.mxu0 0
      %1369 = vmatpush2.bf16.msra.mxu0 0
      %1370 = vmatprep.subr.bf16.mxu0 0
      %1371 = vmatpush2.bf16.msra.mxu0 0
      %1372 = vmatprep.subr.bf16.mxu0 0
      %1373 = vmatpush2.bf16.msra.mxu0 0
      %1374 = vmatprep.subr.bf16.mxu0 0
      %1375 = vmatpush2.bf16.msra.mxu0 0
      %1376 = vmatprep.mubr.bf16.mxu0 0
      %1377 = vmatmul.mubr.bf16.gmra.mxu0 %v536
      %v1378 = vpop.f32.mrf.mxu0
      %v1379 = vadd.f32 %v507, %v1378
      %v1380 = vpop.f32.mrf.mxu0
      %v1381 = vpop.f32.mrf.mxu0
      %v1382 = vadd.f32 %v512, %v1381
      %v1383 = vpop.f32.mrf.mxu0
      %1384 = vmatprep.mubr.bf16.mxu0 0
      %1385 = vmatmul.mubr.bf16.gmra.mxu0 %v539
      %v1386 = vpop.f32.mrf.mxu0
      %v1387 = vadd.f32 %v517, %v1386
      %v1388 = vpop.f32.mrf.mxu0
      %v1389 = vpop.f32.mrf.mxu0
      %v1390 = vadd.f32 %v522, %v1389
      %v1391 = vpop.f32.mrf.mxu0
      %1392 = vdwg.mxu0
      %v1393 = vmax.f32 %v1379, 0.0
      %v1394 = vmax.f32 %v1382, 0.0
      %v1395 = vmax.f32 %v1387, 0.0
      %v1396 = vmax.f32 %v1390, 0.0
      %v1397 = vmax.f32 %v1245, %v1393
      %v1398 = vmax.f32 %v1246, %v1394
      %v1399 = vmax.f32 %v1247, %v1395
      %v1400 = vmax.f32 %v1248, %v1396
      %v1401 = vrot.slane %v1277, 7
      %v1402 = vrot.slane %v1278, 6
      %v1403 = vsel %vm423, %v1402, %v1401
      %v1404 = vrot.slane %v1279, 5
      %v1405 = vsel %vm426, %v1404, %v1403
      %v1406 = vrot.slane %v1280, 4
      %v1407 = vsel %vm429, %v1406, %v1405
      %v1408 = vrot.slane %v1281, 3
      %v1409 = vsel %vm432, %v1408, %v1407
      %v1410 = vrot.slane %v1282, 2
      %v1411 = vsel %vm435, %v1410, %v1409
      %v1412 = vrot.slane %v1283, 1
      %v1413 = vsel %vm438, %v1412, %v1411
      %v1414 = vpack.c.b16 %v1413, %v1413
      %v1416 = vand.u32 %v1414, %v448
      %1418 = vmatprep.subr.bf16.mxu0 0
      %1419 = vmatpush1.bf16.msra.mxu0 0
      %1420 = vmatprep.subr.bf16.mxu0 0
      %1421 = vmatpush1.bf16.msra.mxu0 0
      %1422 = vmatprep.subr.bf16.mxu0 0
      %1423 = vmatpush1.bf16.msra.mxu0 0
      %1424 = vmatprep.subr.bf16.mxu0 0
      %1425 = vmatpush1.bf16.msra.mxu0 0
      %1426 = vmatprep.subr.bf16.mxu0 0
      %1427 = vmatpush1.bf16.msra.mxu0 0
      %1428 = vmatprep.subr.bf16.mxu0 0
      %1429 = vmatpush1.bf16.msra.mxu0 0
      %1430 = vmatprep.subr.bf16.mxu0 0
      %1431 = vmatpush1.bf16.msra.mxu0 0
      %1432 = vmatprep.subr.bf16.mxu0 0
      %1433 = vmatpush1.bf16.msra.mxu0 %v1416
      %1434 = vmatprep.subr.bf16.mxu0 0
      %1435 = vmatpush2.bf16.msra.mxu0 0
      %1436 = vmatprep.subr.bf16.mxu0 0
      %1437 = vmatpush2.bf16.msra.mxu0 0
      %1438 = vmatprep.subr.bf16.mxu0 0
      %1439 = vmatpush2.bf16.msra.mxu0 0
      %1440 = vmatprep.subr.bf16.mxu0 0
      %1441 = vmatpush2.bf16.msra.mxu0 0
      %1442 = vmatprep.subr.bf16.mxu0 0
      %1443 = vmatpush2.bf16.msra.mxu0 0
      %1444 = vmatprep.subr.bf16.mxu0 0
      %1445 = vmatpush2.bf16.msra.mxu0 0
      %1446 = vmatprep.subr.bf16.mxu0 0
      %1447 = vmatpush2.bf16.msra.mxu0 0
      %1448 = vmatprep.subr.bf16.mxu0 0
      %1449 = vmatpush2.bf16.msra.mxu0 0
      %1450 = vmatprep.mubr.bf16.mxu0 0
      %1451 = vmatmul.mubr.bf16.gmra.mxu0 %v443
      %v1452 = vpop.f32.mrf.mxu0
      %v1453 = vadd.f32 %v382, %v1452
      %v1454 = vpop.f32.mrf.mxu0
      %v1455 = vpop.f32.mrf.mxu0
      %v1456 = vadd.f32 %v387, %v1455
      %v1457 = vpop.f32.mrf.mxu0
      %1458 = vdwg.mxu0
      %v1459 = vmax.f32 %v1453, 0.0
      %v1460 = vmax.f32 %v1456, 0.0
      %v1461 = vpack.c.bf16 %v1460, %v1459
      %1462 = vmatprep.subr.bf16.mxu0 0
      %1463 = vmatpush1.bf16.msra.mxu0 0
      %1464 = vmatprep.subr.bf16.mxu0 0
      %1465 = vmatpush1.bf16.msra.mxu0 0
      %1466 = vmatprep.subr.bf16.mxu0 0
      %1467 = vmatpush1.bf16.msra.mxu0 0
      %1468 = vmatprep.subr.bf16.mxu0 0
      %1469 = vmatpush1.bf16.msra.mxu0 0
      %1470 = vmatprep.subr.bf16.mxu0 0
      %1471 = vmatpush1.bf16.msra.mxu0 0
      %1472 = vmatprep.subr.bf16.mxu0 0
      %1473 = vmatpush1.bf16.msra.mxu0 0
      %1474 = vmatprep.subr.bf16.mxu0 0
      %1475 = vmatpush1.bf16.msra.mxu0 0
      %1476 = vmatprep.subr.bf16.mxu0 0
      %1477 = vmatpush1.bf16.msra.mxu0 %v1461
      %1478 = vmatprep.subr.bf16.mxu0 0
      %1479 = vmatpush2.bf16.msra.mxu0 0
      %1480 = vmatprep.subr.bf16.mxu0 0
      %1481 = vmatpush2.bf16.msra.mxu0 0
      %1482 = vmatprep.subr.bf16.mxu0 0
      %1483 = vmatpush2.bf16.msra.mxu0 0
      %1484 = vmatprep.subr.bf16.mxu0 0
      %1485 = vmatpush2.bf16.msra.mxu0 0
      %1486 = vmatprep.subr.bf16.mxu0 0
      %1487 = vmatpush2.bf16.msra.mxu0 0
      %1488 = vmatprep.subr.bf16.mxu0 0
      %1489 = vmatpush2.bf16.msra.mxu0 0
      %1490 = vmatprep.subr.bf16.mxu0 0
      %1491 = vmatpush2.bf16.msra.mxu0 0
      %1492 = vmatprep.subr.bf16.mxu0 0
      %1493 = vmatpush2.bf16.msra.mxu0 0
      %1494 = vmatprep.mubr.bf16.mxu0 0
      %1495 = vmatmul.mubr.bf16.gmra.mxu0 %v536
      %v1496 = vpop.f32.mrf.mxu0
      %v1497 = vadd.f32 %v507, %v1496
      %v1498 = vpop.f32.mrf.mxu0
      %v1499 = vpop.f32.mrf.mxu0
      %v1500 = vadd.f32 %v512, %v1499
      %v1501 = vpop.f32.mrf.mxu0
      %1502 = vmatprep.mubr.bf16.mxu0 0
      %1503 = vmatmul.mubr.bf16.gmra.mxu0 %v539
      %v1504 = vpop.f32.mrf.mxu0
      %v1505 = vadd.f32 %v517, %v1504
      %v1506 = vpop.f32.mrf.mxu0
      %v1507 = vpop.f32.mrf.mxu0
      %v1508 = vadd.f32 %v522, %v1507
      %v1509 = vpop.f32.mrf.mxu0
      %1510 = vdwg.mxu0
      %v1511 = vmax.f32 %v1497, 0.0
      %v1512 = vmax.f32 %v1500, 0.0
      %v1513 = vmax.f32 %v1505, 0.0
      %v1514 = vmax.f32 %v1508, 0.0
      %v1515 = vmax.f32 %v1397, %v1511
      %v1516 = vmax.f32 %v1398, %v1512
      %v1517 = vmax.f32 %v1399, %v1513
      %v1518 = vmax.f32 %v1400, %v1514
      %vm1519 = vcmask 64512
      %1520 = vst.msk [vmem:[%s366] sm:$0xff] %vm1519, %v1515
      %1521 = vst.msk [vmem:[%s366 + $0x8] sm:$0xff] %vm1519, %v1516
      %1522 = vst.msk [vmem:[%s366 + $0x10] sm:$0xff] %vm1519, %v1517
      %1523 = vst.msk [vmem:[%s366 + $0x18] sm:$0xff] %vm1519, %v1518
      %p1524 = scmp.lt.s32.totalorder %s21, 1
      %s1525 = scalar_select %p1524, %s21, 1
      %p1526 = scmp.lt.s32.totalorder %s22, 1
      %s1527 = scalar_select %p1526, %s22, 1
      %p1528 = scmp.lt.s32.totalorder %s23, 0
      %s1529 = scalar_select %p1528, %s23, 0
      %s1530 = smul.addr %s1527, 4
      %s1531 = sadd.s32 %s1529, %s1530
      %s1532 = smul.addr %s1525, 8
      %s1533 = sadd.s32 %s1531, %s1532
      %s1534 = smul.addr %s1533, 8
      %s1535 = scalar_lea.vmem %s5, %s1534
      // Predicated region
      $region41: #{point_sa_module_msg_forward.1} parent=39 // pred_check
        %p1536 = pneg %p191
      $region42: #{point_sa_module_msg_forward.1} parent=39 // pred_check_branch
        %1538 = sbr.rel (%p1536) target = $region44
      $region43: #{point_sa_module_msg_forward.1} parent=39 // pred_region
        _
      $region44: #{point_sa_module_msg_forward.1} parent=39 // pred_fallthru
        _
    $region40: #{point_sa_module_msg_forward.1} parent=5 // pred_fallthru
      _
    %p1539 = scmp.le.s32.totalorder 2, %s11
    // Predicated region
    $region45: #{point_sa_module_msg_forward.1} parent=5 // pred_check
      %p1540 = pneg %p1539
    $region46: #{point_sa_module_msg_forward.1} parent=5 // pred_check_branch
      %1542 = sbr.rel (%p1540) target = $region48
    $region47: #{point_sa_module_msg_forward.1} parent=5 // pred_region
      %s1543 = ssub.s32 %s11, 2
      // Predicated region
      $region49: #{point_sa_module_msg_forward.1} parent=47 // pred_check
        %p1544 = pneg %p197
      $region50: #{point_sa_module_msg_forward.1} parent=47 // pred_check_branch
        %1546 = sbr.rel (%p1544) target = $region52
      $region51: #{point_sa_module_msg_forward.1} parent=47 // pred_region
        %p1547 = scmp.lt.s32.totalorder %s24, 1
        %s1548 = scalar_select %p1547, %s24, 1
        %p1549 = scmp.lt.s32.totalorder %s25, 1
        %s1550 = scalar_select %p1549, %s25, 1
        %p1551 = scmp.lt.s32.totalorder %s26, 0
        %s1552 = scalar_select %p1551, %s26, 0
        %s1553 = smul.addr %s1550, 4
        %s1554 = sadd.s32 %s1552, %s1553
        %s1555 = smul.addr %s1548, 8
        %s1556 = sadd.s32 %s1554, %s1555
        %s1557 = smul.addr %s1556, 8
        %s1558 = scalar_lea.vmem %s5, %s1557
      $region52: #{point_sa_module_msg_forward.1} parent=47 // pred_fallthru
        _
    $region48: #{point_sa_module_msg_forward.1} parent=5 // pred_fallthru
      _
  $region6: #{point_sa_module_msg_forward.1} parent=0 // loop_footer
    %s15 = sadd.s32 1, %s11
  $region7: #{point_sa_module_msg_forward.1} parent=0 // loop_footer_branch
    %10 = sbr.rel target = $region3
  $region8: #{point_sa_module_msg_forward.1} parent=0 // loop_exit
    _

</llo_original>
